<compile_context>
chip_gen: v7x
topology: tpu7x:2x2x1
jax: 0.10.0
libtpu: 0.0.40
codegen_flags: <defaults>
</compile_context>

<pallas_src>
import jax
import jax.numpy as jnp
from jax import lax
from jax.experimental import pallas as pl
from jax.experimental.pallas import tpu as pltpu

EMBED_VOCAB = 10
EMBED_DIM = 32
RNN_IN = 64            # 2 * EMBED_DIM after concat
RNN_HIDDEN = 64
NUM_CLASSES = 10
NUM_CLASSES_PAD = 128  # lane-dense padded class dim for the in-kernel output
SUBLANE = 8


def make_fused_rnn_kernel(B_pad, T):
    R_pad = T * B_pad

    def kernel(idx1_ref,   # (R_pad, 1) int32  time-major padded num1
               idx2_ref,   # (R_pad, 1) int32  time-major padded num2
               t01_ref,    # (20, 64)   stacked [embed@W_ih0.T[:32]; embed@W_ih0.T[32:]]
               b0_ref,     # (1, 64)    b_ih_l0 + b_hh_l0
               u0_ref,     # (64, 64)   W_hh_l0.T
               wu1_ref,    # (128, 64)  stacked [W_ih_l1.T ; W_hh_l1.T]
               b1_ref,     # (1, 64)    b_ih_l1 + b_hh_l1
               wd_ref,     # (64, 128)  Linear.weight.T zero-padded to 128
               bd_ref,     # (1, 128)   Linear.bias zero-padded to 128
               out_ref):   # (R_pad, 128) padded logits
        # ---- fused embedding + layer-0 input projection --------------------
        # one-hot over the 20 stacked table rows; a single (R_pad,20)@(20,64)
        # MXU matmul computes  embed[n1]@W0[:32] + embed[n2]@W0[32:]  per row.
        lanes = lax.broadcasted_iota(jnp.int32, (R_pad, 2 * EMBED_VOCAB), 1)
        oh = jnp.logical_or(
            idx1_ref[...] == lanes,
            (idx2_ref[...] + EMBED_VOCAB) == lanes).astype(jnp.float32)
        xp = (jnp.dot(oh, t01_ref[...],
                      preferred_element_type=jnp.float32) + b0_ref[...])

        # hoist weight loads and the b1 broadcast out of the unrolled loop
        u0 = u0_ref[...]
        wu1 = wu1_ref[...]
        b1b = jnp.broadcast_to(b1_ref[...], (B_pad, RNN_HIDDEN))

        h0 = jnp.zeros((B_pad, RNN_HIDDEN), jnp.float32)
        h1 = jnp.zeros((B_pad, RNN_HIDDEN), jnp.float32)
        h1_steps = []

        # Sequential recurrence over time (T small & static -> unrolled).
        # All per-step operands are full (8,*) sublane tiles (B padded to 8).
        for t in range(T):
            x_t = xp[t * B_pad:(t + 1) * B_pad, :]              # (B_pad, 64)
            # layer 0: only the recurrent matmul remains in the loop
            h0 = jnp.tanh(
                x_t + jnp.dot(h0, u0, preferred_element_type=jnp.float32))
            # layer 1: fused W/U matmul along K = 128
            z = jnp.concatenate([h0, h1], axis=-1)              # (B_pad, 128)
            h1 = jnp.tanh(
                jnp.dot(z, wu1, preferred_element_type=jnp.float32) + b1b)
            h1_steps.append(h1)                                 # stays in vregs

        # ---- hoisted dense head: one matmul, lane-dense unmasked store -----
        h1_all = jnp.concatenate(h1_steps, axis=0)              # (R_pad, 64)
        out_ref[...] = (
            jnp.dot(h1_all, wd_ref[...], preferred_element_type=jnp.float32)
            + bd_ref[...])

    return kernel


def model_forward(num1, num2, packed):
    """Full myPTRNNModel.forward.  num1/num2: (B, T) int32 -> (B, T, 10)."""
    B, T = num1.shape
    B_pad = ((B + SUBLANE - 1) // SUBLANE) * SUBLANE
    R_pad = T * B_pad

    def pack_idx(num):
        # time-major, batch padded to the sublane tile (padded rows use idx 0
        # and are sliced off after the kernel)
        buf = jnp.zeros((T, B_pad), jnp.int32).at[:, :B].set(
            num.T.astype(jnp.int32))
        return buf.reshape(R_pad, 1)

    idx1 = pack_idx(num1)
    idx2 = pack_idx(num2)

    kernel = make_fused_rnn_kernel(B_pad, T)
    out_flat = pl.pallas_call(
        kernel,
        out_shape=jax.ShapeDtypeStruct((R_pad, NUM_CLASSES_PAD), jnp.float32),
        grid=(1,),
        in_specs=[
            pl.BlockSpec((R_pad, 1), lambda i: (0, 0)),                     # idx1
            pl.BlockSpec((R_pad, 1), lambda i: (0, 0)),                     # idx2
            pl.BlockSpec((2 * EMBED_VOCAB, RNN_HIDDEN), lambda i: (0, 0)),  # t01
            pl.BlockSpec((1, RNN_HIDDEN), lambda i: (0, 0)),                # b0
            pl.BlockSpec((RNN_HIDDEN, RNN_HIDDEN), lambda i: (0, 0)),       # u0
            pl.BlockSpec((2 * RNN_HIDDEN, RNN_HIDDEN), lambda i: (0, 0)),   # wu1
            pl.BlockSpec((1, RNN_HIDDEN), lambda i: (0, 0)),                # b1
            pl.BlockSpec((RNN_HIDDEN, NUM_CLASSES_PAD), lambda i: (0, 0)),  # wd
            pl.BlockSpec((1, NUM_CLASSES_PAD), lambda i: (0, 0)),           # bd
        ],
        out_specs=pl.BlockSpec((R_pad, NUM_CLASSES_PAD), lambda i: (0, 0)),
        compiler_params=pltpu.CompilerParams(
            dimension_semantics=("arbitrary",)),
    )(idx1, idx2, packed["t01"], packed["b0"], packed["u0"], packed["wu1"],
      packed["b1"], packed["wd_pad"], packed["bd_pad"])

    # (T*B_pad, 128) -> (B, T, 10)
    out = out_flat.reshape(T, B_pad, NUM_CLASSES_PAD)
    return out[:, :B, :NUM_CLASSES].transpose(1, 0, 2)


def init_params(key):
    """Deterministic init matching PyTorch parameter shapes (transposed)."""
    ks = jax.random.split(key, 12)
    bound = 1.0 / jnp.sqrt(jnp.float32(RNN_HIDDEN))

    def u(k, shape):
        return jax.random.uniform(k, shape, jnp.float32, -bound, bound)

    embed = jax.random.normal(ks[0], (EMBED_VOCAB, EMBED_DIM), jnp.float32)
    return {
        "embed": embed,
        # layer 0
        "w0": u(ks[1], (RNN_IN, RNN_HIDDEN)),        # W_ih_l0.T
        "u0": u(ks[2], (RNN_HIDDEN, RNN_HIDDEN)),    # W_hh_l0.T
        "b0": (u(ks[3], (1, RNN_HIDDEN)) + u(ks[4], (1, RNN_HIDDEN))),
        # layer 1
        "w1": u(ks[5], (RNN_HIDDEN, RNN_HIDDEN)),    # W_ih_l1.T
        "u1": u(ks[6], (RNN_HIDDEN, RNN_HIDDEN)),    # W_hh_l1.T
        "b1": (u(ks[7], (1, RNN_HIDDEN)) + u(ks[8], (1, RNN_HIDDEN))),
        # dense head
        "wd": u(ks[9], (RNN_HIDDEN, NUM_CLASSES)),   # Linear.weight.T
        "bd": u(ks[10], (1, NUM_CLASSES)),
    }


def prepack_params(params):
    """One-time packing for the fused kernel (done at init, not per call)."""
    t0 = params["embed"] @ params["w0"][:EMBED_DIM, :]     # (10, 64)
    t1 = params["embed"] @ params["w0"][EMBED_DIM:, :]     # (10, 64)
    wd_pad = jnp.zeros((RNN_HIDDEN, NUM_CLASSES_PAD), jnp.float32)
    wd_pad = wd_pad.at[:, :NUM_CLASSES].set(params["wd"])
    bd_pad = jnp.zeros((1, NUM_CLASSES_PAD), jnp.float32)
    bd_pad = bd_pad.at[:, :NUM_CLASSES].set(params["bd"])
    packed = {
        "t01": jnp.concatenate([t0, t1], axis=0),                     # (20, 64)
        "b0": params["b0"],
        "u0": params["u0"],
        "wu1": jnp.concatenate([params["w1"], params["u1"]], axis=0),  # (128, 64)
        "b1": params["b1"],
        "wd_pad": wd_pad,
        "bd_pad": bd_pad,
    }
    return jax.tree_util.tree_map(jnp.asarray, packed)


def reference_forward(num1, num2, params):
    """Pure-JAX reference of the original PyTorch math (sanity check)."""
    e1 = params["embed"][num1]
    e2 = params["embed"][num2]
    x = jnp.concatenate([e1, e2], axis=2)                   # (B, T, 64)
    B, T, _ = x.shape
    h0 = jnp.zeros((B, RNN_HIDDEN), jnp.float32)
    h1 = jnp.zeros((B, RNN_HIDDEN), jnp.float32)
    outs = []
    for t in range(T):
        xt = x[:, t, :]
        h0 = jnp.tanh(xt @ params["w0"] + h0 @ params["u0"] + params["b0"])
        h1 = jnp.tanh(h0 @ params["w1"] + h1 @ params["u1"] + params["b1"])
        outs.append(h1 @ params["wd"] + params["bd"])
    return jnp.stack(outs, axis=1)


if __name__ == "__main__":
    key = jax.random.PRNGKey(0)
    kp, k1, k2 = jax.random.split(key, 3)
    params = init_params(kp)
    packed = prepack_params(params)

    B, T = 2, 8
    num1 = jax.random.randint(k1, (B, T), 0, EMBED_VOCAB, dtype=jnp.int32)
    num2 = jax.random.randint(k2, (B, T), 0, EMBED_VOCAB, dtype=jnp.int32)

    logits = model_forward(num1, num2, packed)
    jax.block_until_ready(logits)

    ref = reference_forward(num1, num2, params)
    assert logits.shape == (B, T, NUM_CLASSES)
    assert jnp.allclose(logits, ref, atol=1e-4, rtol=1e-4), \
        float(jnp.max(jnp.abs(logits - ref)))

    print("KERNEL_OK")
</pallas_src>

<mosaic_0001>
module attributes {stable_mosaic.version = 11 : i64} {
  func.func @kernel(%arg0: i32, %arg1: memref<64x1xi32, #tpu.memory_space<vmem>>, %arg2: memref<64x1xi32, #tpu.memory_space<vmem>>, %arg3: memref<20x64xf32, #tpu.memory_space<vmem>>, %arg4: memref<1x64xf32, #tpu.memory_space<vmem>>, %arg5: memref<64x64xf32, #tpu.memory_space<vmem>>, %arg6: memref<128x64xf32, #tpu.memory_space<vmem>>, %arg7: memref<1x64xf32, #tpu.memory_space<vmem>>, %arg8: memref<64x128xf32, #tpu.memory_space<vmem>>, %arg9: memref<1x128xf32, #tpu.memory_space<vmem>>, %arg10: memref<64x128xf32, #tpu.memory_space<vmem>>) attributes {dimension_semantics = [#tpu.dimension_semantics<arbitrary>], iteration_bounds = array<i64: 1>, scalar_prefetch = 0 : i64, scratch_operands = 0 : i64, tpu.core_type = #tpu.core_type<tc>, window_params = [{pipeline_mode = #tpu.pipeline_mode<synchronous>, transform_indices = @transform_0, window_bounds = array<i64: 64, 1>}, {pipeline_mode = #tpu.pipeline_mode<synchronous>, transform_indices = @transform_1, window_bounds = array<i64: 64, 1>}, {pipeline_mode = #tpu.pipeline_mode<synchronous>, transform_indices = @transform_2, window_bounds = array<i64: 20, 64>}, {pipeline_mode = #tpu.pipeline_mode<synchronous>, transform_indices = @transform_3, window_bounds = array<i64: 1, 64>}, {pipeline_mode = #tpu.pipeline_mode<synchronous>, transform_indices = @transform_4, window_bounds = array<i64: 64, 64>}, {pipeline_mode = #tpu.pipeline_mode<synchronous>, transform_indices = @transform_5, window_bounds = array<i64: 128, 64>}, {pipeline_mode = #tpu.pipeline_mode<synchronous>, transform_indices = @transform_6, window_bounds = array<i64: 1, 64>}, {pipeline_mode = #tpu.pipeline_mode<synchronous>, transform_indices = @transform_7, window_bounds = array<i64: 64, 128>}, {pipeline_mode = #tpu.pipeline_mode<synchronous>, transform_indices = @transform_8, window_bounds = array<i64: 1, 128>}, {pipeline_mode = #tpu.pipeline_mode<synchronous>, transform_indices = @transform_9, window_bounds = array<i64: 64, 128>}]} {
    %0 = tpu.iota {dimensions = array<i32: 1>} : vector<64x20xi32>
    %c0 = arith.constant 0 : index
    %c0_0 = arith.constant 0 : index
    %1 = vector.load %arg1[%c0, %c0_0] : memref<64x1xi32, #tpu.memory_space<vmem>>, vector<64x1xi32>
    %2 = vector.broadcast %1 : vector<64x1xi32> to vector<64x20xi32>
    %3 = arith.cmpi eq, %2, %0 : vector<64x20xi32>
    %c0_1 = arith.constant 0 : index
    %c0_2 = arith.constant 0 : index
    %4 = vector.load %arg2[%c0_1, %c0_2] : memref<64x1xi32, #tpu.memory_space<vmem>>, vector<64x1xi32>
    %c10_i32 = arith.constant 10 : i32
    %5 = vector.broadcast %c10_i32 : i32 to vector<64x1xi32>
    %6 = arith.addi %4, %5 : vector<64x1xi32>
    %7 = vector.broadcast %6 : vector<64x1xi32> to vector<64x20xi32>
    %8 = arith.cmpi eq, %7, %0 : vector<64x20xi32>
    %9 = arith.ori %3, %8 : vector<64x20xi1>
    %10 = arith.extui %9 : vector<64x20xi1> to vector<64x20xi32>
    %11 = arith.sitofp %10 : vector<64x20xi32> to vector<64x20xf32>
    %c0_3 = arith.constant 0 : index
    %c0_4 = arith.constant 0 : index
    %12 = vector.load %arg3[%c0_3, %c0_4] : memref<20x64xf32, #tpu.memory_space<vmem>>, vector<20x64xf32>
    %cst = arith.constant dense<0.000000e+00> : vector<64x64xf32>
    %13 = tpu.matmul %11, %12, %cst {dimension_numbers = #tpu.dot_dimension_numbers<[1], [0], [0], [1], [0, 0, 1, 1], [], []>} : vector<64x20xf32>, vector<20x64xf32>, vector<64x64xf32> -> vector<64x64xf32>
    %c0_5 = arith.constant 0 : index
    %c0_6 = arith.constant 0 : index
    %14 = vector.load %arg4[%c0_5, %c0_6] : memref<1x64xf32, #tpu.memory_space<vmem>>, vector<1x64xf32>
    %15 = vector.broadcast %14 : vector<1x64xf32> to vector<64x64xf32>
    %16 = arith.addf %13, %15 : vector<64x64xf32>
    %c0_7 = arith.constant 0 : index
    %c0_8 = arith.constant 0 : index
    %17 = vector.load %arg5[%c0_7, %c0_8] : memref<64x64xf32, #tpu.memory_space<vmem>>, vector<64x64xf32>
    %c0_9 = arith.constant 0 : index
    %c0_10 = arith.constant 0 : index
    %18 = vector.load %arg6[%c0_9, %c0_10] : memref<128x64xf32, #tpu.memory_space<vmem>>, vector<128x64xf32>
    %c0_11 = arith.constant 0 : index
    %c0_12 = arith.constant 0 : index
    %19 = vector.load %arg7[%c0_11, %c0_12] : memref<1x64xf32, #tpu.memory_space<vmem>>, vector<1x64xf32>
    %20 = vector.shape_cast %19 : vector<1x64xf32> to vector<1x64xf32>
    %21 = vector.broadcast %20 : vector<1x64xf32> to vector<8x64xf32>
    %cst_13 = arith.constant 0.000000e+00 : f32
    %22 = vector.broadcast %cst_13 : f32 to vector<8x64xf32>
    %cst_14 = arith.constant 0.000000e+00 : f32
    %23 = vector.broadcast %cst_14 : f32 to vector<8x64xf32>
    %24 = vector.extract_strided_slice %16 {offsets = [0, 0], sizes = [8, 64], strides = [1, 1]} : vector<64x64xf32> to vector<8x64xf32>
    %cst_15 = arith.constant dense<0.000000e+00> : vector<8x64xf32>
    %25 = tpu.matmul %22, %17, %cst_15 {dimension_numbers = #tpu.dot_dimension_numbers<[1], [0], [0], [1], [0, 0, 1, 1], [], []>} : vector<8x64xf32>, vector<64x64xf32>, vector<8x64xf32> -> vector<8x64xf32>
    %26 = arith.addf %24, %25 : vector<8x64xf32>
    %27 = math.tanh %26 : vector<8x64xf32>
    %28 = tpu.concatenate %27, %23 in 1 : vector<8x64xf32>, vector<8x64xf32> -> vector<8x128xf32>
    %cst_16 = arith.constant dense<0.000000e+00> : vector<8x64xf32>
    %29 = tpu.matmul %28, %18, %cst_16 {dimension_numbers = #tpu.dot_dimension_numbers<[1], [0], [0], [1], [0, 0, 1, 1], [], []>} : vector<8x128xf32>, vector<128x64xf32>, vector<8x64xf32> -> vector<8x64xf32>
    %30 = arith.addf %29, %21 : vector<8x64xf32>
    %31 = math.tanh %30 : vector<8x64xf32>
    %32 = vector.extract_strided_slice %16 {offsets = [8, 0], sizes = [8, 64], strides = [1, 1]} : vector<64x64xf32> to vector<8x64xf32>
    %cst_17 = arith.constant dense<0.000000e+00> : vector<8x64xf32>
    %33 = tpu.matmul %27, %17, %cst_17 {dimension_numbers = #tpu.dot_dimension_numbers<[1], [0], [0], [1], [0, 0, 1, 1], [], []>} : vector<8x64xf32>, vector<64x64xf32>, vector<8x64xf32> -> vector<8x64xf32>
    %34 = arith.addf %32, %33 : vector<8x64xf32>
    %35 = math.tanh %34 : vector<8x64xf32>
    %36 = tpu.concatenate %35, %31 in 1 : vector<8x64xf32>, vector<8x64xf32> -> vector<8x128xf32>
    %cst_18 = arith.constant dense<0.000000e+00> : vector<8x64xf32>
    %37 = tpu.matmul %36, %18, %cst_18 {dimension_numbers = #tpu.dot_dimension_numbers<[1], [0], [0], [1], [0, 0, 1, 1], [], []>} : vector<8x128xf32>, vector<128x64xf32>, vector<8x64xf32> -> vector<8x64xf32>
    %38 = arith.addf %37, %21 : vector<8x64xf32>
    %39 = math.tanh %38 : vector<8x64xf32>
    %40 = vector.extract_strided_slice %16 {offsets = [16, 0], sizes = [8, 64], strides = [1, 1]} : vector<64x64xf32> to vector<8x64xf32>
    %cst_19 = arith.constant dense<0.000000e+00> : vector<8x64xf32>
    %41 = tpu.matmul %35, %17, %cst_19 {dimension_numbers = #tpu.dot_dimension_numbers<[1], [0], [0], [1], [0, 0, 1, 1], [], []>} : vector<8x64xf32>, vector<64x64xf32>, vector<8x64xf32> -> vector<8x64xf32>
    %42 = arith.addf %40, %41 : vector<8x64xf32>
    %43 = math.tanh %42 : vector<8x64xf32>
    %44 = tpu.concatenate %43, %39 in 1 : vector<8x64xf32>, vector<8x64xf32> -> vector<8x128xf32>
    %cst_20 = arith.constant dense<0.000000e+00> : vector<8x64xf32>
    %45 = tpu.matmul %44, %18, %cst_20 {dimension_numbers = #tpu.dot_dimension_numbers<[1], [0], [0], [1], [0, 0, 1, 1], [], []>} : vector<8x128xf32>, vector<128x64xf32>, vector<8x64xf32> -> vector<8x64xf32>
    %46 = arith.addf %45, %21 : vector<8x64xf32>
    %47 = math.tanh %46 : vector<8x64xf32>
    %48 = vector.extract_strided_slice %16 {offsets = [24, 0], sizes = [8, 64], strides = [1, 1]} : vector<64x64xf32> to vector<8x64xf32>
    %cst_21 = arith.constant dense<0.000000e+00> : vector<8x64xf32>
    %49 = tpu.matmul %43, %17, %cst_21 {dimension_numbers = #tpu.dot_dimension_numbers<[1], [0], [0], [1], [0, 0, 1, 1], [], []>} : vector<8x64xf32>, vector<64x64xf32>, vector<8x64xf32> -> vector<8x64xf32>
    %50 = arith.addf %48, %49 : vector<8x64xf32>
    %51 = math.tanh %50 : vector<8x64xf32>
    %52 = tpu.concatenate %51, %47 in 1 : vector<8x64xf32>, vector<8x64xf32> -> vector<8x128xf32>
    %cst_22 = arith.constant dense<0.000000e+00> : vector<8x64xf32>
    %53 = tpu.matmul %52, %18, %cst_22 {dimension_numbers = #tpu.dot_dimension_numbers<[1], [0], [0], [1], [0, 0, 1, 1], [], []>} : vector<8x128xf32>, vector<128x64xf32>, vector<8x64xf32> -> vector<8x64xf32>
    %54 = arith.addf %53, %21 : vector<8x64xf32>
    %55 = math.tanh %54 : vector<8x64xf32>
    %56 = vector.extract_strided_slice %16 {offsets = [32, 0], sizes = [8, 64], strides = [1, 1]} : vector<64x64xf32> to vector<8x64xf32>
    %cst_23 = arith.constant dense<0.000000e+00> : vector<8x64xf32>
    %57 = tpu.matmul %51, %17, %cst_23 {dimension_numbers = #tpu.dot_dimension_numbers<[1], [0], [0], [1], [0, 0, 1, 1], [], []>} : vector<8x64xf32>, vector<64x64xf32>, vector<8x64xf32> -> vector<8x64xf32>
    %58 = arith.addf %56, %57 : vector<8x64xf32>
    %59 = math.tanh %58 : vector<8x64xf32>
    %60 = tpu.concatenate %59, %55 in 1 : vector<8x64xf32>, vector<8x64xf32> -> vector<8x128xf32>
    %cst_24 = arith.constant dense<0.000000e+00> : vector<8x64xf32>
    %61 = tpu.matmul %60, %18, %cst_24 {dimension_numbers = #tpu.dot_dimension_numbers<[1], [0], [0], [1], [0, 0, 1, 1], [], []>} : vector<8x128xf32>, vector<128x64xf32>, vector<8x64xf32> -> vector<8x64xf32>
    %62 = arith.addf %61, %21 : vector<8x64xf32>
    %63 = math.tanh %62 : vector<8x64xf32>
    %64 = vector.extract_strided_slice %16 {offsets = [40, 0], sizes = [8, 64], strides = [1, 1]} : vector<64x64xf32> to vector<8x64xf32>
    %cst_25 = arith.constant dense<0.000000e+00> : vector<8x64xf32>
    %65 = tpu.matmul %59, %17, %cst_25 {dimension_numbers = #tpu.dot_dimension_numbers<[1], [0], [0], [1], [0, 0, 1, 1], [], []>} : vector<8x64xf32>, vector<64x64xf32>, vector<8x64xf32> -> vector<8x64xf32>
    %66 = arith.addf %64, %65 : vector<8x64xf32>
    %67 = math.tanh %66 : vector<8x64xf32>
    %68 = tpu.concatenate %67, %63 in 1 : vector<8x64xf32>, vector<8x64xf32> -> vector<8x128xf32>
    %cst_26 = arith.constant dense<0.000000e+00> : vector<8x64xf32>
    %69 = tpu.matmul %68, %18, %cst_26 {dimension_numbers = #tpu.dot_dimension_numbers<[1], [0], [0], [1], [0, 0, 1, 1], [], []>} : vector<8x128xf32>, vector<128x64xf32>, vector<8x64xf32> -> vector<8x64xf32>
    %70 = arith.addf %69, %21 : vector<8x64xf32>
    %71 = math.tanh %70 : vector<8x64xf32>
    %72 = vector.extract_strided_slice %16 {offsets = [48, 0], sizes = [8, 64], strides = [1, 1]} : vector<64x64xf32> to vector<8x64xf32>
    %cst_27 = arith.constant dense<0.000000e+00> : vector<8x64xf32>
    %73 = tpu.matmul %67, %17, %cst_27 {dimension_numbers = #tpu.dot_dimension_numbers<[1], [0], [0], [1], [0, 0, 1, 1], [], []>} : vector<8x64xf32>, vector<64x64xf32>, vector<8x64xf32> -> vector<8x64xf32>
    %74 = arith.addf %72, %73 : vector<8x64xf32>
    %75 = math.tanh %74 : vector<8x64xf32>
    %76 = tpu.concatenate %75, %71 in 1 : vector<8x64xf32>, vector<8x64xf32> -> vector<8x128xf32>
    %cst_28 = arith.constant dense<0.000000e+00> : vector<8x64xf32>
    %77 = tpu.matmul %76, %18, %cst_28 {dimension_numbers = #tpu.dot_dimension_numbers<[1], [0], [0], [1], [0, 0, 1, 1], [], []>} : vector<8x128xf32>, vector<128x64xf32>, vector<8x64xf32> -> vector<8x64xf32>
    %78 = arith.addf %77, %21 : vector<8x64xf32>
    %79 = math.tanh %78 : vector<8x64xf32>
    %80 = vector.extract_strided_slice %16 {offsets = [56, 0], sizes = [8, 64], strides = [1, 1]} : vector<64x64xf32> to vector<8x64xf32>
    %cst_29 = arith.constant dense<0.000000e+00> : vector<8x64xf32>
    %81 = tpu.matmul %75, %17, %cst_29 {dimension_numbers = #tpu.dot_dimension_numbers<[1], [0], [0], [1], [0, 0, 1, 1], [], []>} : vector<8x64xf32>, vector<64x64xf32>, vector<8x64xf32> -> vector<8x64xf32>
    %82 = arith.addf %80, %81 : vector<8x64xf32>
    %83 = math.tanh %82 : vector<8x64xf32>
    %84 = tpu.concatenate %83, %79 in 1 : vector<8x64xf32>, vector<8x64xf32> -> vector<8x128xf32>
    %cst_30 = arith.constant dense<0.000000e+00> : vector<8x64xf32>
    %85 = tpu.matmul %84, %18, %cst_30 {dimension_numbers = #tpu.dot_dimension_numbers<[1], [0], [0], [1], [0, 0, 1, 1], [], []>} : vector<8x128xf32>, vector<128x64xf32>, vector<8x64xf32> -> vector<8x64xf32>
    %86 = arith.addf %85, %21 : vector<8x64xf32>
    %87 = math.tanh %86 : vector<8x64xf32>
    %88 = tpu.concatenate %31, %39, %47, %55, %63, %71, %79, %87 in 0 : vector<8x64xf32>, vector<8x64xf32>, vector<8x64xf32>, vector<8x64xf32>, vector<8x64xf32>, vector<8x64xf32>, vector<8x64xf32>, vector<8x64xf32> -> vector<64x64xf32>
    %c0_31 = arith.constant 0 : index
    %c0_32 = arith.constant 0 : index
    %89 = vector.load %arg8[%c0_31, %c0_32] : memref<64x128xf32, #tpu.memory_space<vmem>>, vector<64x128xf32>
    %cst_33 = arith.constant dense<0.000000e+00> : vector<64x128xf32>
    %90 = tpu.matmul %88, %89, %cst_33 {dimension_numbers = #tpu.dot_dimension_numbers<[1], [0], [0], [1], [0, 0, 1, 1], [], []>} : vector<64x64xf32>, vector<64x128xf32>, vector<64x128xf32> -> vector<64x128xf32>
    %c0_34 = arith.constant 0 : index
    %c0_35 = arith.constant 0 : index
    %91 = vector.load %arg9[%c0_34, %c0_35] : memref<1x128xf32, #tpu.memory_space<vmem>>, vector<1x128xf32>
    %92 = vector.broadcast %91 : vector<1x128xf32> to vector<64x128xf32>
    %93 = arith.addf %90, %92 : vector<64x128xf32>
    %c0_36 = arith.constant 0 : index
    %c0_37 = arith.constant 0 : index
    %94 = vector.load %arg10[%c0_36, %c0_37] : memref<64x128xf32, #tpu.memory_space<vmem>>, vector<64x128xf32>
    tpu.vector_store %arg10[%c0_36, %c0_37], %93 {strides = array<i32>} : memref<64x128xf32, #tpu.memory_space<vmem>>, vector<64x128xf32>,
    return
  }
  func.func @transform_0(%arg0: i32) -> (i32, i32) {
    %c0_i32 = arith.constant 0 : i32
    %c0_i32_0 = arith.constant 0 : i32
    %c0_i32_1 = arith.constant 0 : i32
    return %c0_i32, %c0_i32_0 : i32, i32
  }
  func.func @transform_1(%arg0: i32) -> (i32, i32) {
    %c0_i32 = arith.constant 0 : i32
    %c0_i32_0 = arith.constant 0 : i32
    %c0_i32_1 = arith.constant 0 : i32
    return %c0_i32, %c0_i32_0 : i32, i32
  }
  func.func @transform_2(%arg0: i32) -> (i32, i32) {
    %c0_i32 = arith.constant 0 : i32
    %c0_i32_0 = arith.constant 0 : i32
    %c0_i32_1 = arith.constant 0 : i32
    return %c0_i32, %c0_i32_0 : i32, i32
  }
  func.func @transform_3(%arg0: i32) -> (i32, i32) {
    %c0_i32 = arith.constant 0 : i32
    %c0_i32_0 = arith.constant 0 : i32
    %c0_i32_1 = arith.constant 0 : i32
    return %c0_i32, %c0_i32_0 : i32, i32
  }
  func.func @transform_4(%arg0: i32) -> (i32, i32) {
    %c0_i32 = arith.constant 0 : i32
    %c0_i32_0 = arith.constant 0 : i32
    %c0_i32_1 = arith.constant 0 : i32
    return %c0_i32, %c0_i32_0 : i32, i32
  }
  func.func @transform_5(%arg0: i32) -> (i32, i32) {
    %c0_i32 = arith.constant 0 : i32
    %c0_i32_0 = arith.constant 0 : i32
    %c0_i32_1 = arith.constant 0 : i32
    return %c0_i32, %c0_i32_0 : i32, i32
  }
  func.func @transform_6(%arg0: i32) -> (i32, i32) {
    %c0_i32 = arith.constant 0 : i32
    %c0_i32_0 = arith.constant 0 : i32
    %c0_i32_1 = arith.constant 0 : i32
    return %c0_i32, %c0_i32_0 : i32, i32
  }
  func.func @transform_7(%arg0: i32) -> (i32, i32) {
    %c0_i32 = arith.constant 0 : i32
    %c0_i32_0 = arith.constant 0 : i32
    %c0_i32_1 = arith.constant 0 : i32
    return %c0_i32, %c0_i32_0 : i32, i32
  }
  func.func @transform_8(%arg0: i32) -> (i32, i32) {
    %c0_i32 = arith.constant 0 : i32
    %c0_i32_0 = arith.constant 0 : i32
    %c0_i32_1 = arith.constant 0 : i32
    return %c0_i32, %c0_i32_0 : i32, i32
  }
  func.func @transform_9(%arg0: i32) -> (i32, i32) {
    %c0_i32 = arith.constant 0 : i32
    %c0_i32_0 = arith.constant 0 : i32
    %c0_i32_1 = arith.constant 0 : i32
    return %c0_i32, %c0_i32_0 : i32, i32
  }
}

</mosaic_0001>

<llo_original>
// kernel: tpu_custom_call.1
$region0: #{tpu_custom_call.1}
  #allocation0 [shape = 'u32[]', space=smem, size = 0x4, offset = 0x4, fixed_abs, tag = 'smem constant byte address 0x4 - core index']
  #allocation1 [shape = 'u32[144,128]{1,0:T(1,128)}', space=vmem, size = 0x12000, scoped, tag = 'internal scratch']
  %s0 = inlined_call_operand.vmem [shape: s32[64,1], index: 0, kind: input, shape index: {}]
  %s1 = inlined_call_operand.vmem [shape: s32[64,1], index: 1, kind: input, shape index: {}]
  %s2 = inlined_call_operand.vmem [shape: f32[20,64], index: 2, kind: input, shape index: {}]
  %s3 = inlined_call_operand.vmem [shape: f32[1,64], index: 3, kind: input, shape index: {}]
  %s4 = inlined_call_operand.vmem [shape: f32[64,64], index: 4, kind: input, shape index: {}]
  %s5 = inlined_call_operand.vmem [shape: f32[128,64], index: 5, kind: input, shape index: {}]
  %s6 = inlined_call_operand.vmem [shape: f32[1,64], index: 6, kind: input, shape index: {}]
  %s7 = inlined_call_operand.vmem [shape: f32[64,128], index: 7, kind: input, shape index: {}]
  %s8 = inlined_call_operand.vmem [shape: f32[1,128], index: 8, kind: input, shape index: {}]
  %s9 = inlined_call_operand.hbm [shape: f32[64,128], index: 9, kind: output, shape index: {}]
  %s10 = sld [smem:[#allocation0]]
  $region46: #{tpu_custom_call.1} parent=0
    _
  %s12 = ssub.s32 1, %s10
  %s13 = scalar_select 0, %s12, %s10
  $region1: #{tpu_custom_call.1} parent=0
    #allocation2 [shape = 'u8[32768]{0}', space=vmem, size = 0x8000, scoped, tag = 'output window, operand 0, single buffered']
    #allocation3 [shape = 's32[1]{0}', space=sflag, size = 0x4, scoped, tag = 'scoped memory for tpu_custom_call.1']
    %14 = vsyncpa [#allocation3], 0
    // Predicated region
    $region2: #{tpu_custom_call.1} parent=1 // pred_check
      _
    $region3: #{tpu_custom_call.1} parent=1 // pred_check_branch
      %16 = sbr.rel (0) target = $region5
    $region4: #{tpu_custom_call.1} parent=1 // pred_region
      _
    $region5: #{tpu_custom_call.1} parent=1 // pred_fallthru
      _
    // Predicated region
    $region6: #{tpu_custom_call.1} parent=1 // pred_check
      _
    $region7: #{tpu_custom_call.1} parent=1 // pred_check_branch
      %18 = sbr.rel (0) target = $region9
    $region8: #{tpu_custom_call.1} parent=1 // pred_region
      _
    $region9: #{tpu_custom_call.1} parent=1 // pred_fallthru
      _
    // Predicated region
    $region10: #{tpu_custom_call.1} parent=1 // pred_check
      _
    $region11: #{tpu_custom_call.1} parent=1 // pred_check_branch
      %20 = sbr.rel (0) target = $region13
    $region12: #{tpu_custom_call.1} parent=1 // pred_region
      _
    $region13: #{tpu_custom_call.1} parent=1 // pred_fallthru
      _
    // Predicated region
    $region14: #{tpu_custom_call.1} parent=1 // pred_check
      _
    $region15: #{tpu_custom_call.1} parent=1 // pred_check_branch
      %22 = sbr.rel (0) target = $region17
    $region16: #{tpu_custom_call.1} parent=1 // pred_region
      _
    $region17: #{tpu_custom_call.1} parent=1 // pred_fallthru
      _
    // Predicated region
    $region18: #{tpu_custom_call.1} parent=1 // pred_check
      _
    $region19: #{tpu_custom_call.1} parent=1 // pred_check_branch
      %24 = sbr.rel (0) target = $region21
    $region20: #{tpu_custom_call.1} parent=1 // pred_region
      _
    $region21: #{tpu_custom_call.1} parent=1 // pred_fallthru
      _
    // Predicated region
    $region22: #{tpu_custom_call.1} parent=1 // pred_check
      _
    $region23: #{tpu_custom_call.1} parent=1 // pred_check_branch
      %26 = sbr.rel (0) target = $region25
    $region24: #{tpu_custom_call.1} parent=1 // pred_region
      _
    $region25: #{tpu_custom_call.1} parent=1 // pred_fallthru
      _
    // Predicated region
    $region26: #{tpu_custom_call.1} parent=1 // pred_check
      _
    $region27: #{tpu_custom_call.1} parent=1 // pred_check_branch
      %28 = sbr.rel (0) target = $region29
    $region28: #{tpu_custom_call.1} parent=1 // pred_region
      _
    $region29: #{tpu_custom_call.1} parent=1 // pred_fallthru
      _
    // Predicated region
    $region30: #{tpu_custom_call.1} parent=1 // pred_check
      _
    $region31: #{tpu_custom_call.1} parent=1 // pred_check_branch
      %30 = sbr.rel (0) target = $region33
    $region32: #{tpu_custom_call.1} parent=1 // pred_region
      _
    $region33: #{tpu_custom_call.1} parent=1 // pred_fallthru
      _
    // Predicated region
    $region34: #{tpu_custom_call.1} parent=1 // pred_check
      _
    $region35: #{tpu_custom_call.1} parent=1 // pred_check_branch
      %32 = sbr.rel (0) target = $region37
    $region36: #{tpu_custom_call.1} parent=1 // pred_region
      _
    $region37: #{tpu_custom_call.1} parent=1 // pred_fallthru
      _
    %v33 = vlaneseq
    %v34 = vand.u32 %v33, 127
    %v35 = vld [vmem:[%s0] sm:$0xff]
    %v36 = vld [vmem:[%s0 + $0x8] sm:$0xff]
    %v37 = vld [vmem:[%s0 + $0x10] sm:$0xff]
    %v38 = vld [vmem:[%s0 + $0x18] sm:$0xff]
    %v39 = vld [vmem:[%s0 + $0x20] sm:$0xff]
    %v40 = vld [vmem:[%s0 + $0x28] sm:$0xff]
    %v41 = vld [vmem:[%s0 + $0x30] sm:$0xff]
    %v42 = vld [vmem:[%s0 + $0x38] sm:$0xff]
    %43 = vset.pattern.permute.xlu0 0
    %44 = vperm.xlu0 %43, %v35
    %v45 = vpop.permute.xlu0 %44
    %46 = vset.pattern.permute.xlu0 0
    %47 = vperm.xlu0 %46, %v36
    %v48 = vpop.permute.xlu0 %47
    %49 = vset.pattern.permute.xlu0 0
    %50 = vperm.xlu0 %49, %v37
    %v51 = vpop.permute.xlu0 %50
    %52 = vset.pattern.permute.xlu0 0
    %53 = vperm.xlu0 %52, %v38
    %v54 = vpop.permute.xlu0 %53
    %55 = vset.pattern.permute.xlu0 0
    %56 = vperm.xlu0 %55, %v39
    %v57 = vpop.permute.xlu0 %56
    %58 = vset.pattern.permute.xlu0 0
    %59 = vperm.xlu0 %58, %v40
    %v60 = vpop.permute.xlu0 %59
    %61 = vset.pattern.permute.xlu0 0
    %62 = vperm.xlu0 %61, %v41
    %v63 = vpop.permute.xlu0 %62
    %64 = vset.pattern.permute.xlu0 0
    %65 = vperm.xlu0 %64, %v42
    %v66 = vpop.permute.xlu0 %65
    %vm67 = vcmp.eq.s32.totalorder %v45, %v34
    %vm68 = vcmp.eq.s32.totalorder %v48, %v34
    %vm69 = vcmp.eq.s32.totalorder %v51, %v34
    %vm70 = vcmp.eq.s32.totalorder %v54, %v34
    %vm71 = vcmp.eq.s32.totalorder %v57, %v34
    %vm72 = vcmp.eq.s32.totalorder %v60, %v34
    %vm73 = vcmp.eq.s32.totalorder %v63, %v34
    %vm74 = vcmp.eq.s32.totalorder %v66, %v34
    %v75 = vld [vmem:[%s1] sm:$0xff]
    %v76 = vld [vmem:[%s1 + $0x8] sm:$0xff]
    %v77 = vld [vmem:[%s1 + $0x10] sm:$0xff]
    %v78 = vld [vmem:[%s1 + $0x18] sm:$0xff]
    %v79 = vld [vmem:[%s1 + $0x20] sm:$0xff]
    %v80 = vld [vmem:[%s1 + $0x28] sm:$0xff]
    %v81 = vld [vmem:[%s1 + $0x30] sm:$0xff]
    %v82 = vld [vmem:[%s1 + $0x38] sm:$0xff]
    %v83 = vadd.s32 %v75, 10
    %v84 = vadd.s32 %v76, 10
    %v85 = vadd.s32 %v77, 10
    %v86 = vadd.s32 %v78, 10
    %v87 = vadd.s32 %v79, 10
    %v88 = vadd.s32 %v80, 10
    %v89 = vadd.s32 %v81, 10
    %v90 = vadd.s32 %v82, 10
    %91 = vset.pattern.permute.xlu0 0
    %92 = vperm.xlu0 %91, %v83
    %v93 = vpop.permute.xlu0 %92
    %94 = vset.pattern.permute.xlu0 0
    %95 = vperm.xlu0 %94, %v84
    %v96 = vpop.permute.xlu0 %95
    %97 = vset.pattern.permute.xlu0 0
    %98 = vperm.xlu0 %97, %v85
    %v99 = vpop.permute.xlu0 %98
    %100 = vset.pattern.permute.xlu0 0
    %101 = vperm.xlu0 %100, %v86
    %v102 = vpop.permute.xlu0 %101
    %103 = vset.pattern.permute.xlu0 0
    %104 = vperm.xlu0 %103, %v87
    %v105 = vpop.permute.xlu0 %104
    %106 = vset.pattern.permute.xlu0 0
    %107 = vperm.xlu0 %106, %v88
    %v108 = vpop.permute.xlu0 %107
    %109 = vset.pattern.permute.xlu0 0
    %110 = vperm.xlu0 %109, %v89
    %v111 = vpop.permute.xlu0 %110
    %112 = vset.pattern.permute.xlu0 0
    %113 = vperm.xlu0 %112, %v90
    %v114 = vpop.permute.xlu0 %113
    %vm115 = vcmp.eq.s32.totalorder %v93, %v34
    %vm116 = vcmp.eq.s32.totalorder %v96, %v34
    %vm117 = vcmp.eq.s32.totalorder %v99, %v34
    %vm118 = vcmp.eq.s32.totalorder %v102, %v34
    %vm119 = vcmp.eq.s32.totalorder %v105, %v34
    %vm120 = vcmp.eq.s32.totalorder %v108, %v34
    %vm121 = vcmp.eq.s32.totalorder %v111, %v34
    %vm122 = vcmp.eq.s32.totalorder %v114, %v34
    %vm123 = vmor %vm67, %vm115
    %vm124 = vmor %vm68, %vm116
    %vm125 = vmor %vm69, %vm117
    %vm126 = vmor %vm70, %vm118
    %vm127 = vmor %vm71, %vm119
    %vm128 = vmor %vm72, %vm120
    %vm129 = vmor %vm73, %vm121
    %vm130 = vmor %vm74, %vm122
    %v131 = vsel %vm123, 1, 0
    %v132 = vsel %vm124, 1, 0
    %v133 = vsel %vm125, 1, 0
    %v134 = vsel %vm126, 1, 0
    %v135 = vsel %vm127, 1, 0
    %v136 = vsel %vm128, 1, 0
    %v137 = vsel %vm129, 1, 0
    %v138 = vsel %vm130, 1, 0
    %v139 = vcvt.s32.f32 %v131
    %v140 = vcvt.s32.f32 %v132
    %v141 = vcvt.s32.f32 %v133
    %v142 = vcvt.s32.f32 %v134
    %v143 = vcvt.s32.f32 %v135
    %v144 = vcvt.s32.f32 %v136
    %v145 = vcvt.s32.f32 %v137
    %v146 = vcvt.s32.f32 %v138
    %v147 = vld [vmem:[%s2] sm:$0xff]
    %v148 = vld [vmem:[%s2 + $0x8] sm:$0xff]
    %v149 = vld [vmem:[%s2 + $0x10] sm:$0xf]
    %v150 = vld [vmem:[%s3] sm:$0x1]
    %v152 = vlaneseq
    %v153 = vshrl.u32 %v152, 7
    %v154 = vsub.s32 0, %v153
    %v155 = vrot.slane %v150, %v154
    %vm157 = vcmask 162816
    %v159 = vsel %vm157, %v139, 0
    %v162 = vsel %vm157, %v140, 0
    %v165 = vsel %vm157, %v141, 0
    %v168 = vsel %vm157, %v142, 0
    %v171 = vsel %vm157, %v143, 0
    %v174 = vsel %vm157, %v144, 0
    %v177 = vsel %vm157, %v145, 0
    %v180 = vsel %vm157, %v146, 0
    %vm182 = vcmask 1043456
    %v184 = vsel %vm182, %v149, 0
    %186 = vmatprep.subr.mxu0 0.0
    %187 = vmatpush1.msra.mxu0 %v147
    %188 = vmatprep.subr.mxu0 0.0
    %189 = vmatpush1.msra.mxu0 %v148
    %190 = vmatprep.subr.mxu0 0.0
    %191 = vmatpush1.msra.mxu0 %v184
    %192 = vmatprep.subr.mxu0 0.0
    %193 = vmatpush1.msra.mxu0 0.0
    %194 = vmatprep.subr.mxu0 0.0
    %195 = vmatpush1.msra.mxu0 0.0
    %196 = vmatprep.subr.mxu0 0.0
    %197 = vmatpush1.msra.mxu0 0.0
    %198 = vmatprep.subr.mxu0 0.0
    %199 = vmatpush1.msra.mxu0 0.0
    %200 = vmatprep.subr.mxu0 0.0
    %201 = vmatpush1.msra.mxu0 0.0
    %202 = vmatprep.subr.mxu0 0.0
    %203 = vmatpush1.msra.mxu0 0.0
    %204 = vmatprep.subr.mxu0 0.0
    %205 = vmatpush1.msra.mxu0 0.0
    %206 = vmatprep.subr.mxu0 0.0
    %207 = vmatpush1.msra.mxu0 0.0
    %208 = vmatprep.subr.mxu0 0.0
    %209 = vmatpush1.msra.mxu0 0.0
    %210 = vmatprep.subr.mxu0 0.0
    %211 = vmatpush1.msra.mxu0 0.0
    %212 = vmatprep.subr.mxu0 0.0
    %213 = vmatpush1.msra.mxu0 0.0
    %214 = vmatprep.subr.mxu0 0.0
    %215 = vmatpush1.msra.mxu0 0.0
    %216 = vmatprep.subr.mxu0 0.0
    %217 = vmatpush1.msra.mxu0 0.0
    %218 = vmatprep.subr.mxu0 0.0
    %219 = vmatpush1.msra.mxu0 0.0
    %220 = vmatprep.subr.mxu0 0.0
    %221 = vmatpush1.msra.mxu0 0.0
    %222 = vmatprep.subr.mxu0 0.0
    %223 = vmatpush1.msra.mxu0 0.0
    %224 = vmatprep.subr.mxu0 0.0
    %225 = vmatpush1.msra.mxu0 0.0
    %226 = vmatprep.subr.mxu0 0.0
    %227 = vmatpush1.msra.mxu0 0.0
    %228 = vmatprep.subr.mxu0 0.0
    %229 = vmatpush1.msra.mxu0 0.0
    %230 = vmatprep.subr.mxu0 0.0
    %231 = vmatpush1.msra.mxu0 0.0
    %232 = vmatprep.subr.mxu0 0.0
    %233 = vmatpush1.msra.mxu0 0.0
    %234 = vmatprep.subr.mxu0 0.0
    %235 = vmatpush1.msra.mxu0 0.0
    %236 = vmatprep.subr.mxu0 0.0
    %237 = vmatpush1.msra.mxu0 0.0
    %238 = vmatprep.subr.mxu0 0.0
    %239 = vmatpush1.msra.mxu0 0.0
    %240 = vmatprep.subr.mxu0 0.0
    %241 = vmatpush1.msra.mxu0 0.0
    %242 = vmatprep.subr.mxu0 0.0
    %243 = vmatpush1.msra.mxu0 0.0
    %244 = vmatprep.subr.mxu0 0.0
    %245 = vmatpush1.msra.mxu0 0.0
    %246 = vmatprep.subr.mxu0 0.0
    %247 = vmatpush1.msra.mxu0 0.0
    %248 = vmatprep.subr.mxu0 0.0
    %249 = vmatpush1.msra.mxu0 0.0
    %250 = vmatprep.mubr.f32.mxu0 0.0
    %251 = vmatmul.mubr.f32.gmra.mrb[0].mxu0 %v159
    %v252 = vpop.f32.mrb[0].mxu0
    %v253 = vadd.f32 %v155, %v252
    %v254 = vpop.f32.mrb[0].mxu0
    %255 = vmatprep.mubr.f32.mxu0 0.0
    %256 = vmatmul.mubr.f32.gmra.mrb[0].mxu0 %v162
    %v257 = vpop.f32.mrb[0].mxu0
    %v258 = vadd.f32 %v155, %v257
    %v259 = vpop.f32.mrb[0].mxu0
    %260 = vmatprep.mubr.f32.mxu0 0.0
    %261 = vmatmul.mubr.f32.gmra.mrb[0].mxu0 %v165
    %v262 = vpop.f32.mrb[0].mxu0
    %v263 = vadd.f32 %v155, %v262
    %v264 = vpop.f32.mrb[0].mxu0
    %265 = vmatprep.mubr.f32.mxu0 0.0
    %266 = vmatmul.mubr.f32.gmra.mrb[0].mxu0 %v168
    %v267 = vpop.f32.mrb[0].mxu0
    %v268 = vadd.f32 %v155, %v267
    %v269 = vpop.f32.mrb[0].mxu0
    %270 = vmatprep.mubr.f32.mxu0 0.0
    %271 = vmatmul.mubr.f32.gmra.mrb[0].mxu0 %v171
    %v272 = vpop.f32.mrb[0].mxu0
    %v273 = vadd.f32 %v155, %v272
    %v274 = vpop.f32.mrb[0].mxu0
    %275 = vmatprep.mubr.f32.mxu0 0.0
    %276 = vmatmul.mubr.f32.gmra.mrb[0].mxu0 %v174
    %v277 = vpop.f32.mrb[0].mxu0
    %v278 = vadd.f32 %v155, %v277
    %v279 = vpop.f32.mrb[0].mxu0
    %280 = vmatprep.mubr.f32.mxu0 0.0
    %281 = vmatmul.mubr.f32.gmra.mrb[0].mxu0 %v177
    %v282 = vpop.f32.mrb[0].mxu0
    %v283 = vadd.f32 %v155, %v282
    %v284 = vpop.f32.mrb[0].mxu0
    %285 = vmatprep.mubr.f32.mxu0 0.0
    %286 = vmatmul.mubr.f32.gmra.mrb[0].mxu0 %v180
    %v287 = vpop.f32.mrb[0].mxu0
    %v288 = vadd.f32 %v155, %v287
    %v289 = vpop.f32.mrb[0].mxu0
    %290 = vdwg.mxu0
    %v291 = vld [vmem:[%s4] sm:$0xff]
    %v292 = vld [vmem:[%s4 + $0x8] sm:$0xff]
    %v293 = vld [vmem:[%s4 + $0x10] sm:$0xff]
    %v294 = vld [vmem:[%s4 + $0x18] sm:$0xff]
    %v295 = vld [vmem:[%s4 + $0x20] sm:$0xff]
    %v296 = vld [vmem:[%s4 + $0x28] sm:$0xff]
    %v297 = vld [vmem:[%s4 + $0x30] sm:$0xff]
    %v298 = vld [vmem:[%s4 + $0x38] sm:$0xff]
    %v299 = vld [vmem:[%s5] sm:$0xff]
    %v300 = vld [vmem:[%s5 + $0x8] sm:$0xff]
    %v301 = vld [vmem:[%s5 + $0x10] sm:$0xff]
    %v302 = vld [vmem:[%s5 + $0x18] sm:$0xff]
    %v303 = vld [vmem:[%s5 + $0x20] sm:$0xff]
    %v304 = vld [vmem:[%s5 + $0x28] sm:$0xff]
    %v305 = vld [vmem:[%s5 + $0x30] sm:$0xff]
    %v306 = vld [vmem:[%s5 + $0x38] sm:$0xff]
    %v307 = vld [vmem:[%s5 + $0x40] sm:$0xff]
    %v308 = vld [vmem:[%s5 + $0x48] sm:$0xff]
    %v309 = vld [vmem:[%s5 + $0x50] sm:$0xff]
    %v310 = vld [vmem:[%s5 + $0x58] sm:$0xff]
    %v311 = vld [vmem:[%s5 + $0x60] sm:$0xff]
    %v312 = vld [vmem:[%s5 + $0x68] sm:$0xff]
    %v313 = vld [vmem:[%s5 + $0x70] sm:$0xff]
    %v314 = vld [vmem:[%s5 + $0x78] sm:$0xff]
    %v315 = vld [vmem:[%s6] sm:$0x1]
    %v317 = vlaneseq
    %v318 = vshrl.u32 %v317, 7
    %v319 = vsub.s32 0, %v318
    %v320 = vrot.slane %v315, %v319
    %vm322 = vcmask 523264
    %v324 = vsel %vm322, 0.0, 0
    %326 = vmatprep.subr.mxu0 0.0
    %327 = vmatpush1.msra.mxu0 %v291
    %328 = vmatprep.subr.mxu0 0.0
    %329 = vmatpush1.msra.mxu0 %v292
    %330 = vmatprep.subr.mxu0 0.0
    %331 = vmatpush1.msra.mxu0 %v293
    %332 = vmatprep.subr.mxu0 0.0
    %333 = vmatpush1.msra.mxu0 %v294
    %334 = vmatprep.subr.mxu0 0.0
    %335 = vmatpush1.msra.mxu0 %v295
    %336 = vmatprep.subr.mxu0 0.0
    %337 = vmatpush1.msra.mxu0 %v296
    %338 = vmatprep.subr.mxu0 0.0
    %339 = vmatpush1.msra.mxu0 %v297
    %340 = vmatprep.subr.mxu0 0.0
    %341 = vmatpush1.msra.mxu0 %v298
    %342 = vmatprep.subr.mxu0 0.0
    %343 = vmatpush1.msra.mxu0 0.0
    %344 = vmatprep.subr.mxu0 0.0
    %345 = vmatpush1.msra.mxu0 0.0
    %346 = vmatprep.subr.mxu0 0.0
    %347 = vmatpush1.msra.mxu0 0.0
    %348 = vmatprep.subr.mxu0 0.0
    %349 = vmatpush1.msra.mxu0 0.0
    %350 = vmatprep.subr.mxu0 0.0
    %351 = vmatpush1.msra.mxu0 0.0
    %352 = vmatprep.subr.mxu0 0.0
    %353 = vmatpush1.msra.mxu0 0.0
    %354 = vmatprep.subr.mxu0 0.0
    %355 = vmatpush1.msra.mxu0 0.0
    %356 = vmatprep.subr.mxu0 0.0
    %357 = vmatpush1.msra.mxu0 0.0
    %358 = vmatprep.subr.mxu0 0.0
    %359 = vmatpush1.msra.mxu0 0.0
    %360 = vmatprep.subr.mxu0 0.0
    %361 = vmatpush1.msra.mxu0 0.0
    %362 = vmatprep.subr.mxu0 0.0
    %363 = vmatpush1.msra.mxu0 0.0
    %364 = vmatprep.subr.mxu0 0.0
    %365 = vmatpush1.msra.mxu0 0.0
    %366 = vmatprep.subr.mxu0 0.0
    %367 = vmatpush1.msra.mxu0 0.0
    %368 = vmatprep.subr.mxu0 0.0
    %369 = vmatpush1.msra.mxu0 0.0
    %370 = vmatprep.subr.mxu0 0.0
    %371 = vmatpush1.msra.mxu0 0.0
    %372 = vmatprep.subr.mxu0 0.0
    %373 = vmatpush1.msra.mxu0 0.0
    %374 = vmatprep.subr.mxu0 0.0
    %375 = vmatpush1.msra.mxu0 0.0
    %376 = vmatprep.subr.mxu0 0.0
    %377 = vmatpush1.msra.mxu0 0.0
    %378 = vmatprep.subr.mxu0 0.0
    %379 = vmatpush1.msra.mxu0 0.0
    %380 = vmatprep.subr.mxu0 0.0
    %381 = vmatpush1.msra.mxu0 0.0
    %382 = vmatprep.subr.mxu0 0.0
    %383 = vmatpush1.msra.mxu0 0.0
    %384 = vmatprep.subr.mxu0 0.0
    %385 = vmatpush1.msra.mxu0 0.0
    %386 = vmatprep.subr.mxu0 0.0
    %387 = vmatpush1.msra.mxu0 0.0
    %388 = vmatprep.subr.mxu0 0.0
    %389 = vmatpush1.msra.mxu0 0.0
    %390 = vmatprep.mubr.f32.mxu0 0.0
    %391 = vmatmul.mubr.f32.gmra.mrb[0].mxu0 %v324
    %v392 = vpop.f32.mrb[0].mxu0
    %v393 = vadd.f32 0.0, %v392
    %v394 = vpop.f32.mrb[0].mxu0
    %395 = vdwg.mxu0
    %v396 = vadd.f32 %v253, %v393
    %v397 = vtanh.pop %v396
    %v398 = vsel %vm322, %v397, 0.0
    %399 = vmatprep.subr.mxu0 0.0
    %400 = vmatpush1.msra.mxu0 %v299
    %401 = vmatprep.subr.mxu0 0.0
    %402 = vmatpush1.msra.mxu0 %v300
    %403 = vmatprep.subr.mxu0 0.0
    %404 = vmatpush1.msra.mxu0 %v301
    %405 = vmatprep.subr.mxu0 0.0
    %406 = vmatpush1.msra.mxu0 %v302
    %407 = vmatprep.subr.mxu0 0.0
    %408 = vmatpush1.msra.mxu0 %v303
    %409 = vmatprep.subr.mxu0 0.0
    %410 = vmatpush1.msra.mxu0 %v304
    %411 = vmatprep.subr.mxu0 0.0
    %412 = vmatpush1.msra.mxu0 %v305
    %413 = vmatprep.subr.mxu0 0.0
    %414 = vmatpush1.msra.mxu0 %v306
    %415 = vmatprep.subr.mxu0 0.0
    %416 = vmatpush1.msra.mxu0 %v307
    %417 = vmatprep.subr.mxu0 0.0
    %418 = vmatpush1.msra.mxu0 %v308
    %419 = vmatprep.subr.mxu0 0.0
    %420 = vmatpush1.msra.mxu0 %v309
    %421 = vmatprep.subr.mxu0 0.0
    %422 = vmatpush1.msra.mxu0 %v310
    %423 = vmatprep.subr.mxu0 0.0
    %424 = vmatpush1.msra.mxu0 %v311
    %425 = vmatprep.subr.mxu0 0.0
    %426 = vmatpush1.msra.mxu0 %v312
    %427 = vmatprep.subr.mxu0 0.0
    %428 = vmatpush1.msra.mxu0 %v313
    %429 = vmatprep.subr.mxu0 0.0
    %430 = vmatpush1.msra.mxu0 %v314
    %431 = vmatprep.subr.mxu0 0.0
    %432 = vmatpush1.msra.mxu0 0.0
    %433 = vmatprep.subr.mxu0 0.0
    %434 = vmatpush1.msra.mxu0 0.0
    %435 = vmatprep.subr.mxu0 0.0
    %436 = vmatpush1.msra.mxu0 0.0
    %437 = vmatprep.subr.mxu0 0.0
    %438 = vmatpush1.msra.mxu0 0.0
    %439 = vmatprep.subr.mxu0 0.0
    %440 = vmatpush1.msra.mxu0 0.0
    %441 = vmatprep.subr.mxu0 0.0
    %442 = vmatpush1.msra.mxu0 0.0
    %443 = vmatprep.subr.mxu0 0.0
    %444 = vmatpush1.msra.mxu0 0.0
    %445 = vmatprep.subr.mxu0 0.0
    %446 = vmatpush1.msra.mxu0 0.0
    %447 = vmatprep.subr.mxu0 0.0
    %448 = vmatpush1.msra.mxu0 0.0
    %449 = vmatprep.subr.mxu0 0.0
    %450 = vmatpush1.msra.mxu0 0.0
    %451 = vmatprep.subr.mxu0 0.0
    %452 = vmatpush1.msra.mxu0 0.0
    %453 = vmatprep.subr.mxu0 0.0
    %454 = vmatpush1.msra.mxu0 0.0
    %455 = vmatprep.subr.mxu0 0.0
    %456 = vmatpush1.msra.mxu0 0.0
    %457 = vmatprep.subr.mxu0 0.0
    %458 = vmatpush1.msra.mxu0 0.0
    %459 = vmatprep.subr.mxu0 0.0
    %460 = vmatpush1.msra.mxu0 0.0
    %461 = vmatprep.subr.mxu0 0.0
    %462 = vmatpush1.msra.mxu0 0.0
    %463 = vmatprep.mubr.f32.mxu0 0.0
    %464 = vmatmul.mubr.f32.gmra.mrb[0].mxu0 %v398
    %v465 = vpop.f32.mrb[0].mxu0
    %v466 = vadd.f32 %v320, %v465
    %v467 = vpop.f32.mrb[0].mxu0
    %468 = vdwg.mxu0
    %v469 = vtanh.pop %v466
    %v471 = vsel %vm322, %v397, 0
    %473 = vmatprep.subr.mxu0 0.0
    %474 = vmatpush1.msra.mxu0 %v291
    %475 = vmatprep.subr.mxu0 0.0
    %476 = vmatpush1.msra.mxu0 %v292
    %477 = vmatprep.subr.mxu0 0.0
    %478 = vmatpush1.msra.mxu0 %v293
    %479 = vmatprep.subr.mxu0 0.0
    %480 = vmatpush1.msra.mxu0 %v294
    %481 = vmatprep.subr.mxu0 0.0
    %482 = vmatpush1.msra.mxu0 %v295
    %483 = vmatprep.subr.mxu0 0.0
    %484 = vmatpush1.msra.mxu0 %v296
    %485 = vmatprep.subr.mxu0 0.0
    %486 = vmatpush1.msra.mxu0 %v297
    %487 = vmatprep.subr.mxu0 0.0
    %488 = vmatpush1.msra.mxu0 %v298
    %489 = vmatprep.subr.mxu0 0.0
    %490 = vmatpush1.msra.mxu0 0.0
    %491 = vmatprep.subr.mxu0 0.0
    %492 = vmatpush1.msra.mxu0 0.0
    %493 = vmatprep.subr.mxu0 0.0
    %494 = vmatpush1.msra.mxu0 0.0
    %495 = vmatprep.subr.mxu0 0.0
    %496 = vmatpush1.msra.mxu0 0.0
    %497 = vmatprep.subr.mxu0 0.0
    %498 = vmatpush1.msra.mxu0 0.0
    %499 = vmatprep.subr.mxu0 0.0
    %500 = vmatpush1.msra.mxu0 0.0
    %501 = vmatprep.subr.mxu0 0.0
    %502 = vmatpush1.msra.mxu0 0.0
    %503 = vmatprep.subr.mxu0 0.0
    %504 = vmatpush1.msra.mxu0 0.0
    %505 = vmatprep.subr.mxu0 0.0
    %506 = vmatpush1.msra.mxu0 0.0
    %507 = vmatprep.subr.mxu0 0.0
    %508 = vmatpush1.msra.mxu0 0.0
    %509 = vmatprep.subr.mxu0 0.0
    %510 = vmatpush1.msra.mxu0 0.0
    %511 = vmatprep.subr.mxu0 0.0
    %512 = vmatpush1.msra.mxu0 0.0
    %513 = vmatprep.subr.mxu0 0.0
    %514 = vmatpush1.msra.mxu0 0.0
    %515 = vmatprep.subr.mxu0 0.0
    %516 = vmatpush1.msra.mxu0 0.0
    %517 = vmatprep.subr.mxu0 0.0
    %518 = vmatpush1.msra.mxu0 0.0
    %519 = vmatprep.subr.mxu0 0.0
    %520 = vmatpush1.msra.mxu0 0.0
    %521 = vmatprep.subr.mxu0 0.0
    %522 = vmatpush1.msra.mxu0 0.0
    %523 = vmatprep.subr.mxu0 0.0
    %524 = vmatpush1.msra.mxu0 0.0
    %525 = vmatprep.subr.mxu0 0.0
    %526 = vmatpush1.msra.mxu0 0.0
    %527 = vmatprep.subr.mxu0 0.0
    %528 = vmatpush1.msra.mxu0 0.0
    %529 = vmatprep.subr.mxu0 0.0
    %530 = vmatpush1.msra.mxu0 0.0
    %531 = vmatprep.subr.mxu0 0.0
    %532 = vmatpush1.msra.mxu0 0.0
    %533 = vmatprep.subr.mxu0 0.0
    %534 = vmatpush1.msra.mxu0 0.0
    %535 = vmatprep.subr.mxu0 0.0
    %536 = vmatpush1.msra.mxu0 0.0
    %537 = vmatprep.mubr.f32.mxu0 0.0
    %538 = vmatmul.mubr.f32.gmra.mrb[0].mxu0 %v471
    %v539 = vpop.f32.mrb[0].mxu0
    %v540 = vadd.f32 0.0, %v539
    %v541 = vpop.f32.mrb[0].mxu0
    %542 = vdwg.mxu0
    %v543 = vadd.f32 %v258, %v540
    %v544 = vtanh.pop %v543
    %546 = vrot.lane.b32.xlu0 %v469, 64
    %v547 = vpop.permute.xlu0 %546
    %v549 = vsel %vm322, %v544, %v547
    %550 = vmatprep.subr.mxu0 0.0
    %551 = vmatpush1.msra.mxu0 %v299
    %552 = vmatprep.subr.mxu0 0.0
    %553 = vmatpush1.msra.mxu0 %v300
    %554 = vmatprep.subr.mxu0 0.0
    %555 = vmatpush1.msra.mxu0 %v301
    %556 = vmatprep.subr.mxu0 0.0
    %557 = vmatpush1.msra.mxu0 %v302
    %558 = vmatprep.subr.mxu0 0.0
    %559 = vmatpush1.msra.mxu0 %v303
    %560 = vmatprep.subr.mxu0 0.0
    %561 = vmatpush1.msra.mxu0 %v304
    %562 = vmatprep.subr.mxu0 0.0
    %563 = vmatpush1.msra.mxu0 %v305
    %564 = vmatprep.subr.mxu0 0.0
    %565 = vmatpush1.msra.mxu0 %v306
    %566 = vmatprep.subr.mxu0 0.0
    %567 = vmatpush1.msra.mxu0 %v307
    %568 = vmatprep.subr.mxu0 0.0
    %569 = vmatpush1.msra.mxu0 %v308
    %570 = vmatprep.subr.mxu0 0.0
    %571 = vmatpush1.msra.mxu0 %v309
    %572 = vmatprep.subr.mxu0 0.0
    %573 = vmatpush1.msra.mxu0 %v310
    %574 = vmatprep.subr.mxu0 0.0
    %575 = vmatpush1.msra.mxu0 %v311
    %576 = vmatprep.subr.mxu0 0.0
    %577 = vmatpush1.msra.mxu0 %v312
    %578 = vmatprep.subr.mxu0 0.0
    %579 = vmatpush1.msra.mxu0 %v313
    %580 = vmatprep.subr.mxu0 0.0
    %581 = vmatpush1.msra.mxu0 %v314
    %582 = vmatprep.subr.mxu0 0.0
    %583 = vmatpush1.msra.mxu0 0.0
    %584 = vmatprep.subr.mxu0 0.0
    %585 = vmatpush1.msra.mxu0 0.0
    %586 = vmatprep.subr.mxu0 0.0
    %587 = vmatpush1.msra.mxu0 0.0
    %588 = vmatprep.subr.mxu0 0.0
    %589 = vmatpush1.msra.mxu0 0.0
    %590 = vmatprep.subr.mxu0 0.0
    %591 = vmatpush1.msra.mxu0 0.0
    %592 = vmatprep.subr.mxu0 0.0
    %593 = vmatpush1.msra.mxu0 0.0
    %594 = vmatprep.subr.mxu0 0.0
    %595 = vmatpush1.msra.mxu0 0.0
    %596 = vmatprep.subr.mxu0 0.0
    %597 = vmatpush1.msra.mxu0 0.0
    %598 = vmatprep.subr.mxu0 0.0
    %599 = vmatpush1.msra.mxu0 0.0
    %600 = vmatprep.subr.mxu0 0.0
    %601 = vmatpush1.msra.mxu0 0.0
    %602 = vmatprep.subr.mxu0 0.0
    %603 = vmatpush1.msra.mxu0 0.0
    %604 = vmatprep.subr.mxu0 0.0
    %605 = vmatpush1.msra.mxu0 0.0
    %606 = vmatprep.subr.mxu0 0.0
    %607 = vmatpush1.msra.mxu0 0.0
    %608 = vmatprep.subr.mxu0 0.0
    %609 = vmatpush1.msra.mxu0 0.0
    %610 = vmatprep.subr.mxu0 0.0
    %611 = vmatpush1.msra.mxu0 0.0
    %612 = vmatprep.subr.mxu0 0.0
    %613 = vmatpush1.msra.mxu0 0.0
    %614 = vmatprep.mubr.f32.mxu0 0.0
    %615 = vmatmul.mubr.f32.gmra.mrb[0].mxu0 %v549
    %v616 = vpop.f32.mrb[0].mxu0
    %v617 = vadd.f32 %v320, %v616
    %v618 = vpop.f32.mrb[0].mxu0
    %619 = vdwg.mxu0
    %v620 = vtanh.pop %v617
    %v622 = vsel %vm322, %v544, 0
    %624 = vmatprep.subr.mxu0 0.0
    %625 = vmatpush1.msra.mxu0 %v291
    %626 = vmatprep.subr.mxu0 0.0
    %627 = vmatpush1.msra.mxu0 %v292
    %628 = vmatprep.subr.mxu0 0.0
    %629 = vmatpush1.msra.mxu0 %v293
    %630 = vmatprep.subr.mxu0 0.0
    %631 = vmatpush1.msra.mxu0 %v294
    %632 = vmatprep.subr.mxu0 0.0
    %633 = vmatpush1.msra.mxu0 %v295
    %634 = vmatprep.subr.mxu0 0.0
    %635 = vmatpush1.msra.mxu0 %v296
    %636 = vmatprep.subr.mxu0 0.0
    %637 = vmatpush1.msra.mxu0 %v297
    %638 = vmatprep.subr.mxu0 0.0
    %639 = vmatpush1.msra.mxu0 %v298
    %640 = vmatprep.subr.mxu0 0.0
    %641 = vmatpush1.msra.mxu0 0.0
    %642 = vmatprep.subr.mxu0 0.0
    %643 = vmatpush1.msra.mxu0 0.0
    %644 = vmatprep.subr.mxu0 0.0
    %645 = vmatpush1.msra.mxu0 0.0
    %646 = vmatprep.subr.mxu0 0.0
    %647 = vmatpush1.msra.mxu0 0.0
    %648 = vmatprep.subr.mxu0 0.0
    %649 = vmatpush1.msra.mxu0 0.0
    %650 = vmatprep.subr.mxu0 0.0
    %651 = vmatpush1.msra.mxu0 0.0
    %652 = vmatprep.subr.mxu0 0.0
    %653 = vmatpush1.msra.mxu0 0.0
    %654 = vmatprep.subr.mxu0 0.0
    %655 = vmatpush1.msra.mxu0 0.0
    %656 = vmatprep.subr.mxu0 0.0
    %657 = vmatpush1.msra.mxu0 0.0
    %658 = vmatprep.subr.mxu0 0.0
    %659 = vmatpush1.msra.mxu0 0.0
    %660 = vmatprep.subr.mxu0 0.0
    %661 = vmatpush1.msra.mxu0 0.0
    %662 = vmatprep.subr.mxu0 0.0
    %663 = vmatpush1.msra.mxu0 0.0
    %664 = vmatprep.subr.mxu0 0.0
    %665 = vmatpush1.msra.mxu0 0.0
    %666 = vmatprep.subr.mxu0 0.0
    %667 = vmatpush1.msra.mxu0 0.0
    %668 = vmatprep.subr.mxu0 0.0
    %669 = vmatpush1.msra.mxu0 0.0
    %670 = vmatprep.subr.mxu0 0.0
    %671 = vmatpush1.msra.mxu0 0.0
    %672 = vmatprep.subr.mxu0 0.0
    %673 = vmatpush1.msra.mxu0 0.0
    %674 = vmatprep.subr.mxu0 0.0
    %675 = vmatpush1.msra.mxu0 0.0
    %676 = vmatprep.subr.mxu0 0.0
    %677 = vmatpush1.msra.mxu0 0.0
    %678 = vmatprep.subr.mxu0 0.0
    %679 = vmatpush1.msra.mxu0 0.0
    %680 = vmatprep.subr.mxu0 0.0
    %681 = vmatpush1.msra.mxu0 0.0
    %682 = vmatprep.subr.mxu0 0.0
    %683 = vmatpush1.msra.mxu0 0.0
    %684 = vmatprep.subr.mxu0 0.0
    %685 = vmatpush1.msra.mxu0 0.0
    %686 = vmatprep.subr.mxu0 0.0
    %687 = vmatpush1.msra.mxu0 0.0
    %688 = vmatprep.mubr.f32.mxu0 0.0
    %689 = vmatmul.mubr.f32.gmra.mrb[0].mxu0 %v622
    %v690 = vpop.f32.mrb[0].mxu0
    %v691 = vadd.f32 0.0, %v690
    %v692 = vpop.f32.mrb[0].mxu0
    %693 = vdwg.mxu0
    %v694 = vadd.f32 %v263, %v691
    %v695 = vtanh.pop %v694
    %697 = vrot.lane.b32.xlu0 %v620, 64
    %v698 = vpop.permute.xlu0 %697
    %v700 = vsel %vm322, %v695, %v698
    %701 = vmatprep.subr.mxu0 0.0
    %702 = vmatpush1.msra.mxu0 %v299
    %703 = vmatprep.subr.mxu0 0.0
    %704 = vmatpush1.msra.mxu0 %v300
    %705 = vmatprep.subr.mxu0 0.0
    %706 = vmatpush1.msra.mxu0 %v301
    %707 = vmatprep.subr.mxu0 0.0
    %708 = vmatpush1.msra.mxu0 %v302
    %709 = vmatprep.subr.mxu0 0.0
    %710 = vmatpush1.msra.mxu0 %v303
    %711 = vmatprep.subr.mxu0 0.0
    %712 = vmatpush1.msra.mxu0 %v304
    %713 = vmatprep.subr.mxu0 0.0
    %714 = vmatpush1.msra.mxu0 %v305
    %715 = vmatprep.subr.mxu0 0.0
    %716 = vmatpush1.msra.mxu0 %v306
    %717 = vmatprep.subr.mxu0 0.0
    %718 = vmatpush1.msra.mxu0 %v307
    %719 = vmatprep.subr.mxu0 0.0
    %720 = vmatpush1.msra.mxu0 %v308
    %721 = vmatprep.subr.mxu0 0.0
    %722 = vmatpush1.msra.mxu0 %v309
    %723 = vmatprep.subr.mxu0 0.0
    %724 = vmatpush1.msra.mxu0 %v310
    %725 = vmatprep.subr.mxu0 0.0
    %726 = vmatpush1.msra.mxu0 %v311
    %727 = vmatprep.subr.mxu0 0.0
    %728 = vmatpush1.msra.mxu0 %v312
    %729 = vmatprep.subr.mxu0 0.0
    %730 = vmatpush1.msra.mxu0 %v313
    %731 = vmatprep.subr.mxu0 0.0
    %732 = vmatpush1.msra.mxu0 %v314
    %733 = vmatprep.subr.mxu0 0.0
    %734 = vmatpush1.msra.mxu0 0.0
    %735 = vmatprep.subr.mxu0 0.0
    %736 = vmatpush1.msra.mxu0 0.0
    %737 = vmatprep.subr.mxu0 0.0
    %738 = vmatpush1.msra.mxu0 0.0
    %739 = vmatprep.subr.mxu0 0.0
    %740 = vmatpush1.msra.mxu0 0.0
    %741 = vmatprep.subr.mxu0 0.0
    %742 = vmatpush1.msra.mxu0 0.0
    %743 = vmatprep.subr.mxu0 0.0
    %744 = vmatpush1.msra.mxu0 0.0
    %745 = vmatprep.subr.mxu0 0.0
    %746 = vmatpush1.msra.mxu0 0.0
    %747 = vmatprep.subr.mxu0 0.0
    %748 = vmatpush1.msra.mxu0 0.0
    %749 = vmatprep.subr.mxu0 0.0
    %750 = vmatpush1.msra.mxu0 0.0
    %751 = vmatprep.subr.mxu0 0.0
    %752 = vmatpush1.msra.mxu0 0.0
    %753 = vmatprep.subr.mxu0 0.0
    %754 = vmatpush1.msra.mxu0 0.0
    %755 = vmatprep.subr.mxu0 0.0
    %756 = vmatpush1.msra.mxu0 0.0
    %757 = vmatprep.subr.mxu0 0.0
    %758 = vmatpush1.msra.mxu0 0.0
    %759 = vmatprep.subr.mxu0 0.0
    %760 = vmatpush1.msra.mxu0 0.0
    %761 = vmatprep.subr.mxu0 0.0
    %762 = vmatpush1.msra.mxu0 0.0
    %763 = vmatprep.subr.mxu0 0.0
    %764 = vmatpush1.msra.mxu0 0.0
    %765 = vmatprep.mubr.f32.mxu0 0.0
    %766 = vmatmul.mubr.f32.gmra.mrb[0].mxu0 %v700
    %v767 = vpop.f32.mrb[0].mxu0
    %v768 = vadd.f32 %v320, %v767
    %v769 = vpop.f32.mrb[0].mxu0
    %770 = vdwg.mxu0
    %v771 = vtanh.pop %v768
    %v773 = vsel %vm322, %v695, 0
    %775 = vmatprep.subr.mxu0 0.0
    %776 = vmatpush1.msra.mxu0 %v291
    %777 = vmatprep.subr.mxu0 0.0
    %778 = vmatpush1.msra.mxu0 %v292
    %779 = vmatprep.subr.mxu0 0.0
    %780 = vmatpush1.msra.mxu0 %v293
    %781 = vmatprep.subr.mxu0 0.0
    %782 = vmatpush1.msra.mxu0 %v294
    %783 = vmatprep.subr.mxu0 0.0
    %784 = vmatpush1.msra.mxu0 %v295
    %785 = vmatprep.subr.mxu0 0.0
    %786 = vmatpush1.msra.mxu0 %v296
    %787 = vmatprep.subr.mxu0 0.0
    %788 = vmatpush1.msra.mxu0 %v297
    %789 = vmatprep.subr.mxu0 0.0
    %790 = vmatpush1.msra.mxu0 %v298
    %791 = vmatprep.subr.mxu0 0.0
    %792 = vmatpush1.msra.mxu0 0.0
    %793 = vmatprep.subr.mxu0 0.0
    %794 = vmatpush1.msra.mxu0 0.0
    %795 = vmatprep.subr.mxu0 0.0
    %796 = vmatpush1.msra.mxu0 0.0
    %797 = vmatprep.subr.mxu0 0.0
    %798 = vmatpush1.msra.mxu0 0.0
    %799 = vmatprep.subr.mxu0 0.0
    %800 = vmatpush1.msra.mxu0 0.0
    %801 = vmatprep.subr.mxu0 0.0
    %802 = vmatpush1.msra.mxu0 0.0
    %803 = vmatprep.subr.mxu0 0.0
    %804 = vmatpush1.msra.mxu0 0.0
    %805 = vmatprep.subr.mxu0 0.0
    %806 = vmatpush1.msra.mxu0 0.0
    %807 = vmatprep.subr.mxu0 0.0
    %808 = vmatpush1.msra.mxu0 0.0
    %809 = vmatprep.subr.mxu0 0.0
    %810 = vmatpush1.msra.mxu0 0.0
    %811 = vmatprep.subr.mxu0 0.0
    %812 = vmatpush1.msra.mxu0 0.0
    %813 = vmatprep.subr.mxu0 0.0
    %814 = vmatpush1.msra.mxu0 0.0
    %815 = vmatprep.subr.mxu0 0.0
    %816 = vmatpush1.msra.mxu0 0.0
    %817 = vmatprep.subr.mxu0 0.0
    %818 = vmatpush1.msra.mxu0 0.0
    %819 = vmatprep.subr.mxu0 0.0
    %820 = vmatpush1.msra.mxu0 0.0
    %821 = vmatprep.subr.mxu0 0.0
    %822 = vmatpush1.msra.mxu0 0.0
    %823 = vmatprep.subr.mxu0 0.0
    %824 = vmatpush1.msra.mxu0 0.0
    %825 = vmatprep.subr.mxu0 0.0
    %826 = vmatpush1.msra.mxu0 0.0
    %827 = vmatprep.subr.mxu0 0.0
    %828 = vmatpush1.msra.mxu0 0.0
    %829 = vmatprep.subr.mxu0 0.0
    %830 = vmatpush1.msra.mxu0 0.0
    %831 = vmatprep.subr.mxu0 0.0
    %832 = vmatpush1.msra.mxu0 0.0
    %833 = vmatprep.subr.mxu0 0.0
    %834 = vmatpush1.msra.mxu0 0.0
    %835 = vmatprep.subr.mxu0 0.0
    %836 = vmatpush1.msra.mxu0 0.0
    %837 = vmatprep.subr.mxu0 0.0
    %838 = vmatpush1.msra.mxu0 0.0
    %839 = vmatprep.mubr.f32.mxu0 0.0
    %840 = vmatmul.mubr.f32.gmra.mrb[0].mxu0 %v773
    %v841 = vpop.f32.mrb[0].mxu0
    %v842 = vadd.f32 0.0, %v841
    %v843 = vpop.f32.mrb[0].mxu0
    %844 = vdwg.mxu0
    %v845 = vadd.f32 %v268, %v842
    %v846 = vtanh.pop %v845
    %848 = vrot.lane.b32.xlu0 %v771, 64
    %v849 = vpop.permute.xlu0 %848
    %v851 = vsel %vm322, %v846, %v849
    %852 = vmatprep.subr.mxu0 0.0
    %853 = vmatpush1.msra.mxu0 %v299
    %854 = vmatprep.subr.mxu0 0.0
    %855 = vmatpush1.msra.mxu0 %v300
    %856 = vmatprep.subr.mxu0 0.0
    %857 = vmatpush1.msra.mxu0 %v301
    %858 = vmatprep.subr.mxu0 0.0
    %859 = vmatpush1.msra.mxu0 %v302
    %860 = vmatprep.subr.mxu0 0.0
    %861 = vmatpush1.msra.mxu0 %v303
    %862 = vmatprep.subr.mxu0 0.0
    %863 = vmatpush1.msra.mxu0 %v304
    %864 = vmatprep.subr.mxu0 0.0
    %865 = vmatpush1.msra.mxu0 %v305
    %866 = vmatprep.subr.mxu0 0.0
    %867 = vmatpush1.msra.mxu0 %v306
    %868 = vmatprep.subr.mxu0 0.0
    %869 = vmatpush1.msra.mxu0 %v307
    %870 = vmatprep.subr.mxu0 0.0
    %871 = vmatpush1.msra.mxu0 %v308
    %872 = vmatprep.subr.mxu0 0.0
    %873 = vmatpush1.msra.mxu0 %v309
    %874 = vmatprep.subr.mxu0 0.0
    %875 = vmatpush1.msra.mxu0 %v310
    %876 = vmatprep.subr.mxu0 0.0
    %877 = vmatpush1.msra.mxu0 %v311
    %878 = vmatprep.subr.mxu0 0.0
    %879 = vmatpush1.msra.mxu0 %v312
    %880 = vmatprep.subr.mxu0 0.0
    %881 = vmatpush1.msra.mxu0 %v313
    %882 = vmatprep.subr.mxu0 0.0
    %883 = vmatpush1.msra.mxu0 %v314
    %884 = vmatprep.subr.mxu0 0.0
    %885 = vmatpush1.msra.mxu0 0.0
    %886 = vmatprep.subr.mxu0 0.0
    %887 = vmatpush1.msra.mxu0 0.0
    %888 = vmatprep.subr.mxu0 0.0
    %889 = vmatpush1.msra.mxu0 0.0
    %890 = vmatprep.subr.mxu0 0.0
    %891 = vmatpush1.msra.mxu0 0.0
    %892 = vmatprep.subr.mxu0 0.0
    %893 = vmatpush1.msra.mxu0 0.0
    %894 = vmatprep.subr.mxu0 0.0
    %895 = vmatpush1.msra.mxu0 0.0
    %896 = vmatprep.subr.mxu0 0.0
    %897 = vmatpush1.msra.mxu0 0.0
    %898 = vmatprep.subr.mxu0 0.0
    %899 = vmatpush1.msra.mxu0 0.0
    %900 = vmatprep.subr.mxu0 0.0
    %901 = vmatpush1.msra.mxu0 0.0
    %902 = vmatprep.subr.mxu0 0.0
    %903 = vmatpush1.msra.mxu0 0.0
    %904 = vmatprep.subr.mxu0 0.0
    %905 = vmatpush1.msra.mxu0 0.0
    %906 = vmatprep.subr.mxu0 0.0
    %907 = vmatpush1.msra.mxu0 0.0
    %908 = vmatprep.subr.mxu0 0.0
    %909 = vmatpush1.msra.mxu0 0.0
    %910 = vmatprep.subr.mxu0 0.0
    %911 = vmatpush1.msra.mxu0 0.0
    %912 = vmatprep.subr.mxu0 0.0
    %913 = vmatpush1.msra.mxu0 0.0
    %914 = vmatprep.subr.mxu0 0.0
    %915 = vmatpush1.msra.mxu0 0.0
    %916 = vmatprep.mubr.f32.mxu0 0.0
    %917 = vmatmul.mubr.f32.gmra.mrb[0].mxu0 %v851
    %v918 = vpop.f32.mrb[0].mxu0
    %v919 = vadd.f32 %v320, %v918
    %v920 = vpop.f32.mrb[0].mxu0
    %921 = vdwg.mxu0
    %v922 = vtanh.pop %v919
    %v924 = vsel %vm322, %v846, 0
    %926 = vmatprep.subr.mxu0 0.0
    %927 = vmatpush1.msra.mxu0 %v291
    %928 = vmatprep.subr.mxu0 0.0
    %929 = vmatpush1.msra.mxu0 %v292
    %930 = vmatprep.subr.mxu0 0.0
    %931 = vmatpush1.msra.mxu0 %v293
    %932 = vmatprep.subr.mxu0 0.0
    %933 = vmatpush1.msra.mxu0 %v294
    %934 = vmatprep.subr.mxu0 0.0
    %935 = vmatpush1.msra.mxu0 %v295
    %936 = vmatprep.subr.mxu0 0.0
    %937 = vmatpush1.msra.mxu0 %v296
    %938 = vmatprep.subr.mxu0 0.0
    %939 = vmatpush1.msra.mxu0 %v297
    %940 = vmatprep.subr.mxu0 0.0
    %941 = vmatpush1.msra.mxu0 %v298
    %942 = vmatprep.subr.mxu0 0.0
    %943 = vmatpush1.msra.mxu0 0.0
    %944 = vmatprep.subr.mxu0 0.0
    %945 = vmatpush1.msra.mxu0 0.0
    %946 = vmatprep.subr.mxu0 0.0
    %947 = vmatpush1.msra.mxu0 0.0
    %948 = vmatprep.subr.mxu0 0.0
    %949 = vmatpush1.msra.mxu0 0.0
    %950 = vmatprep.subr.mxu0 0.0
    %951 = vmatpush1.msra.mxu0 0.0
    %952 = vmatprep.subr.mxu0 0.0
    %953 = vmatpush1.msra.mxu0 0.0
    %954 = vmatprep.subr.mxu0 0.0
    %955 = vmatpush1.msra.mxu0 0.0
    %956 = vmatprep.subr.mxu0 0.0
    %957 = vmatpush1.msra.mxu0 0.0
    %958 = vmatprep.subr.mxu0 0.0
    %959 = vmatpush1.msra.mxu0 0.0
    %960 = vmatprep.subr.mxu0 0.0
    %961 = vmatpush1.msra.mxu0 0.0
    %962 = vmatprep.subr.mxu0 0.0
    %963 = vmatpush1.msra.mxu0 0.0
    %964 = vmatprep.subr.mxu0 0.0
    %965 = vmatpush1.msra.mxu0 0.0
    %966 = vmatprep.subr.mxu0 0.0
    %967 = vmatpush1.msra.mxu0 0.0
    %968 = vmatprep.subr.mxu0 0.0
    %969 = vmatpush1.msra.mxu0 0.0
    %970 = vmatprep.subr.mxu0 0.0
    %971 = vmatpush1.msra.mxu0 0.0
    %972 = vmatprep.subr.mxu0 0.0
    %973 = vmatpush1.msra.mxu0 0.0
    %974 = vmatprep.subr.mxu0 0.0
    %975 = vmatpush1.msra.mxu0 0.0
    %976 = vmatprep.subr.mxu0 0.0
    %977 = vmatpush1.msra.mxu0 0.0
    %978 = vmatprep.subr.mxu0 0.0
    %979 = vmatpush1.msra.mxu0 0.0
    %980 = vmatprep.subr.mxu0 0.0
    %981 = vmatpush1.msra.mxu0 0.0
    %982 = vmatprep.subr.mxu0 0.0
    %983 = vmatpush1.msra.mxu0 0.0
    %984 = vmatprep.subr.mxu0 0.0
    %985 = vmatpush1.msra.mxu0 0.0
    %986 = vmatprep.subr.mxu0 0.0
    %987 = vmatpush1.msra.mxu0 0.0
    %988 = vmatprep.subr.mxu0 0.0
    %989 = vmatpush1.msra.mxu0 0.0
    %990 = vmatprep.mubr.f32.mxu0 0.0
    %991 = vmatmul.mubr.f32.gmra.mrb[0].mxu0 %v924
    %v992 = vpop.f32.mrb[0].mxu0
    %v993 = vadd.f32 0.0, %v992
    %v994 = vpop.f32.mrb[0].mxu0
    %995 = vdwg.mxu0
    %v996 = vadd.f32 %v273, %v993
    %v997 = vtanh.pop %v996
    %999 = vrot.lane.b32.xlu0 %v922, 64
    %v1000 = vpop.permute.xlu0 %999
    %v1002 = vsel %vm322, %v997, %v1000
    %1003 = vmatprep.subr.mxu0 0.0
    %1004 = vmatpush1.msra.mxu0 %v299
    %1005 = vmatprep.subr.mxu0 0.0
    %1006 = vmatpush1.msra.mxu0 %v300
    %1007 = vmatprep.subr.mxu0 0.0
    %1008 = vmatpush1.msra.mxu0 %v301
    %1009 = vmatprep.subr.mxu0 0.0
    %1010 = vmatpush1.msra.mxu0 %v302
    %1011 = vmatprep.subr.mxu0 0.0
    %1012 = vmatpush1.msra.mxu0 %v303
    %1013 = vmatprep.subr.mxu0 0.0
    %1014 = vmatpush1.msra.mxu0 %v304
    %1015 = vmatprep.subr.mxu0 0.0
    %1016 = vmatpush1.msra.mxu0 %v305
    %1017 = vmatprep.subr.mxu0 0.0
    %1018 = vmatpush1.msra.mxu0 %v306
    %1019 = vmatprep.subr.mxu0 0.0
    %1020 = vmatpush1.msra.mxu0 %v307
    %1021 = vmatprep.subr.mxu0 0.0
    %1022 = vmatpush1.msra.mxu0 %v308
    %1023 = vmatprep.subr.mxu0 0.0
    %1024 = vmatpush1.msra.mxu0 %v309
    %1025 = vmatprep.subr.mxu0 0.0
    %1026 = vmatpush1.msra.mxu0 %v310
    %1027 = vmatprep.subr.mxu0 0.0
    %1028 = vmatpush1.msra.mxu0 %v311
    %1029 = vmatprep.subr.mxu0 0.0
    %1030 = vmatpush1.msra.mxu0 %v312
    %1031 = vmatprep.subr.mxu0 0.0
    %1032 = vmatpush1.msra.mxu0 %v313
    %1033 = vmatprep.subr.mxu0 0.0
    %1034 = vmatpush1.msra.mxu0 %v314
    %1035 = vmatprep.subr.mxu0 0.0
    %1036 = vmatpush1.msra.mxu0 0.0
    %1037 = vmatprep.subr.mxu0 0.0
    %1038 = vmatpush1.msra.mxu0 0.0
    %1039 = vmatprep.subr.mxu0 0.0
    %1040 = vmatpush1.msra.mxu0 0.0
    %1041 = vmatprep.subr.mxu0 0.0
    %1042 = vmatpush1.msra.mxu0 0.0
    %1043 = vmatprep.subr.mxu0 0.0
    %1044 = vmatpush1.msra.mxu0 0.0
    %1045 = vmatprep.subr.mxu0 0.0
    %1046 = vmatpush1.msra.mxu0 0.0
    %1047 = vmatprep.subr.mxu0 0.0
    %1048 = vmatpush1.msra.mxu0 0.0
    %1049 = vmatprep.subr.mxu0 0.0
    %1050 = vmatpush1.msra.mxu0 0.0
    %1051 = vmatprep.subr.mxu0 0.0
    %1052 = vmatpush1.msra.mxu0 0.0
    %1053 = vmatprep.subr.mxu0 0.0
    %1054 = vmatpush1.msra.mxu0 0.0
    %1055 = vmatprep.subr.mxu0 0.0
    %1056 = vmatpush1.msra.mxu0 0.0
    %1057 = vmatprep.subr.mxu0 0.0
    %1058 = vmatpush1.msra.mxu0 0.0
    %1059 = vmatprep.subr.mxu0 0.0
    %1060 = vmatpush1.msra.mxu0 0.0
    %1061 = vmatprep.subr.mxu0 0.0
    %1062 = vmatpush1.msra.mxu0 0.0
    %1063 = vmatprep.subr.mxu0 0.0
    %1064 = vmatpush1.msra.mxu0 0.0
    %1065 = vmatprep.subr.mxu0 0.0
    %1066 = vmatpush1.msra.mxu0 0.0
    %1067 = vmatprep.mubr.f32.mxu0 0.0
    %1068 = vmatmul.mubr.f32.gmra.mrb[0].mxu0 %v1002
    %v1069 = vpop.f32.mrb[0].mxu0
    %v1070 = vadd.f32 %v320, %v1069
    %v1071 = vpop.f32.mrb[0].mxu0
    %1072 = vdwg.mxu0
    %v1073 = vtanh.pop %v1070
    %v1075 = vsel %vm322, %v997, 0
    %1077 = vmatprep.subr.mxu0 0.0
    %1078 = vmatpush1.msra.mxu0 %v291
    %1079 = vmatprep.subr.mxu0 0.0
    %1080 = vmatpush1.msra.mxu0 %v292
    %1081 = vmatprep.subr.mxu0 0.0
    %1082 = vmatpush1.msra.mxu0 %v293
    %1083 = vmatprep.subr.mxu0 0.0
    %1084 = vmatpush1.msra.mxu0 %v294
    %1085 = vmatprep.subr.mxu0 0.0
    %1086 = vmatpush1.msra.mxu0 %v295
    %1087 = vmatprep.subr.mxu0 0.0
    %1088 = vmatpush1.msra.mxu0 %v296
    %1089 = vmatprep.subr.mxu0 0.0
    %1090 = vmatpush1.msra.mxu0 %v297
    %1091 = vmatprep.subr.mxu0 0.0
    %1092 = vmatpush1.msra.mxu0 %v298
    %1093 = vmatprep.subr.mxu0 0.0
    %1094 = vmatpush1.msra.mxu0 0.0
    %1095 = vmatprep.subr.mxu0 0.0
    %1096 = vmatpush1.msra.mxu0 0.0
    %1097 = vmatprep.subr.mxu0 0.0
    %1098 = vmatpush1.msra.mxu0 0.0
    %1099 = vmatprep.subr.mxu0 0.0
    %1100 = vmatpush1.msra.mxu0 0.0
    %1101 = vmatprep.subr.mxu0 0.0
    %1102 = vmatpush1.msra.mxu0 0.0
    %1103 = vmatprep.subr.mxu0 0.0
    %1104 = vmatpush1.msra.mxu0 0.0
    %1105 = vmatprep.subr.mxu0 0.0
    %1106 = vmatpush1.msra.mxu0 0.0
    %1107 = vmatprep.subr.mxu0 0.0
    %1108 = vmatpush1.msra.mxu0 0.0
    %1109 = vmatprep.subr.mxu0 0.0
    %1110 = vmatpush1.msra.mxu0 0.0
    %1111 = vmatprep.subr.mxu0 0.0
    %1112 = vmatpush1.msra.mxu0 0.0
    %1113 = vmatprep.subr.mxu0 0.0
    %1114 = vmatpush1.msra.mxu0 0.0
    %1115 = vmatprep.subr.mxu0 0.0
    %1116 = vmatpush1.msra.mxu0 0.0
    %1117 = vmatprep.subr.mxu0 0.0
    %1118 = vmatpush1.msra.mxu0 0.0
    %1119 = vmatprep.subr.mxu0 0.0
    %1120 = vmatpush1.msra.mxu0 0.0
    %1121 = vmatprep.subr.mxu0 0.0
    %1122 = vmatpush1.msra.mxu0 0.0
    %1123 = vmatprep.subr.mxu0 0.0
    %1124 = vmatpush1.msra.mxu0 0.0
    %1125 = vmatprep.subr.mxu0 0.0
    %1126 = vmatpush1.msra.mxu0 0.0
    %1127 = vmatprep.subr.mxu0 0.0
    %1128 = vmatpush1.msra.mxu0 0.0
    %1129 = vmatprep.subr.mxu0 0.0
    %1130 = vmatpush1.msra.mxu0 0.0
    %1131 = vmatprep.subr.mxu0 0.0
    %1132 = vmatpush1.msra.mxu0 0.0
    %1133 = vmatprep.subr.mxu0 0.0
    %1134 = vmatpush1.msra.mxu0 0.0
    %1135 = vmatprep.subr.mxu0 0.0
    %1136 = vmatpush1.msra.mxu0 0.0
    %1137 = vmatprep.subr.mxu0 0.0
    %1138 = vmatpush1.msra.mxu0 0.0
    %1139 = vmatprep.subr.mxu0 0.0
    %1140 = vmatpush1.msra.mxu0 0.0
    %1141 = vmatprep.mubr.f32.mxu0 0.0
    %1142 = vmatmul.mubr.f32.gmra.mrb[0].mxu0 %v1075
    %v1143 = vpop.f32.mrb[0].mxu0
    %v1144 = vadd.f32 0.0, %v1143
    %v1145 = vpop.f32.mrb[0].mxu0
    %1146 = vdwg.mxu0
    %v1147 = vadd.f32 %v278, %v1144
    %v1148 = vtanh.pop %v1147
    %1150 = vrot.lane.b32.xlu0 %v1073, 64
    %v1151 = vpop.permute.xlu0 %1150
    %v1153 = vsel %vm322, %v1148, %v1151
    %1154 = vmatprep.subr.mxu0 0.0
    %1155 = vmatpush1.msra.mxu0 %v299
    %1156 = vmatprep.subr.mxu0 0.0
    %1157 = vmatpush1.msra.mxu0 %v300
    %1158 = vmatprep.subr.mxu0 0.0
    %1159 = vmatpush1.msra.mxu0 %v301
    %1160 = vmatprep.subr.mxu0 0.0
    %1161 = vmatpush1.msra.mxu0 %v302
    %1162 = vmatprep.subr.mxu0 0.0
    %1163 = vmatpush1.msra.mxu0 %v303
    %1164 = vmatprep.subr.mxu0 0.0
    %1165 = vmatpush1.msra.mxu0 %v304
    %1166 = vmatprep.subr.mxu0 0.0
    %1167 = vmatpush1.msra.mxu0 %v305
    %1168 = vmatprep.subr.mxu0 0.0
    %1169 = vmatpush1.msra.mxu0 %v306
    %1170 = vmatprep.subr.mxu0 0.0
    %1171 = vmatpush1.msra.mxu0 %v307
    %1172 = vmatprep.subr.mxu0 0.0
    %1173 = vmatpush1.msra.mxu0 %v308
    %1174 = vmatprep.subr.mxu0 0.0
    %1175 = vmatpush1.msra.mxu0 %v309
    %1176 = vmatprep.subr.mxu0 0.0
    %1177 = vmatpush1.msra.mxu0 %v310
    %1178 = vmatprep.subr.mxu0 0.0
    %1179 = vmatpush1.msra.mxu0 %v311
    %1180 = vmatprep.subr.mxu0 0.0
    %1181 = vmatpush1.msra.mxu0 %v312
    %1182 = vmatprep.subr.mxu0 0.0
    %1183 = vmatpush1.msra.mxu0 %v313
    %1184 = vmatprep.subr.mxu0 0.0
    %1185 = vmatpush1.msra.mxu0 %v314
    %1186 = vmatprep.subr.mxu0 0.0
    %1187 = vmatpush1.msra.mxu0 0.0
    %1188 = vmatprep.subr.mxu0 0.0
    %1189 = vmatpush1.msra.mxu0 0.0
    %1190 = vmatprep.subr.mxu0 0.0
    %1191 = vmatpush1.msra.mxu0 0.0
    %1192 = vmatprep.subr.mxu0 0.0
    %1193 = vmatpush1.msra.mxu0 0.0
    %1194 = vmatprep.subr.mxu0 0.0
    %1195 = vmatpush1.msra.mxu0 0.0
    %1196 = vmatprep.subr.mxu0 0.0
    %1197 = vmatpush1.msra.mxu0 0.0
    %1198 = vmatprep.subr.mxu0 0.0
    %1199 = vmatpush1.msra.mxu0 0.0
    %1200 = vmatprep.subr.mxu0 0.0
    %1201 = vmatpush1.msra.mxu0 0.0
    %1202 = vmatprep.subr.mxu0 0.0
    %1203 = vmatpush1.msra.mxu0 0.0
    %1204 = vmatprep.subr.mxu0 0.0
    %1205 = vmatpush1.msra.mxu0 0.0
    %1206 = vmatprep.subr.mxu0 0.0
    %1207 = vmatpush1.msra.mxu0 0.0
    %1208 = vmatprep.subr.mxu0 0.0
    %1209 = vmatpush1.msra.mxu0 0.0
    %1210 = vmatprep.subr.mxu0 0.0
    %1211 = vmatpush1.msra.mxu0 0.0
    %1212 = vmatprep.subr.mxu0 0.0
    %1213 = vmatpush1.msra.mxu0 0.0
    %1214 = vmatprep.subr.mxu0 0.0
    %1215 = vmatpush1.msra.mxu0 0.0
    %1216 = vmatprep.subr.mxu0 0.0
    %1217 = vmatpush1.msra.mxu0 0.0
    %1218 = vmatprep.mubr.f32.mxu0 0.0
    %1219 = vmatmul.mubr.f32.gmra.mrb[0].mxu0 %v1153
    %v1220 = vpop.f32.mrb[0].mxu0
    %v1221 = vadd.f32 %v320, %v1220
    %v1222 = vpop.f32.mrb[0].mxu0
    %1223 = vdwg.mxu0
    %v1224 = vtanh.pop %v1221
    %v1226 = vsel %vm322, %v1148, 0
    %1228 = vmatprep.subr.mxu0 0.0
    %1229 = vmatpush1.msra.mxu0 %v291
    %1230 = vmatprep.subr.mxu0 0.0
    %1231 = vmatpush1.msra.mxu0 %v292
    %1232 = vmatprep.subr.mxu0 0.0
    %1233 = vmatpush1.msra.mxu0 %v293
    %1234 = vmatprep.subr.mxu0 0.0
    %1235 = vmatpush1.msra.mxu0 %v294
    %1236 = vmatprep.subr.mxu0 0.0
    %1237 = vmatpush1.msra.mxu0 %v295
    %1238 = vmatprep.subr.mxu0 0.0
    %1239 = vmatpush1.msra.mxu0 %v296
    %1240 = vmatprep.subr.mxu0 0.0
    %1241 = vmatpush1.msra.mxu0 %v297
    %1242 = vmatprep.subr.mxu0 0.0
    %1243 = vmatpush1.msra.mxu0 %v298
    %1244 = vmatprep.subr.mxu0 0.0
    %1245 = vmatpush1.msra.mxu0 0.0
    %1246 = vmatprep.subr.mxu0 0.0
    %1247 = vmatpush1.msra.mxu0 0.0
    %1248 = vmatprep.subr.mxu0 0.0
    %1249 = vmatpush1.msra.mxu0 0.0
    %1250 = vmatprep.subr.mxu0 0.0
    %1251 = vmatpush1.msra.mxu0 0.0
    %1252 = vmatprep.subr.mxu0 0.0
    %1253 = vmatpush1.msra.mxu0 0.0
    %1254 = vmatprep.subr.mxu0 0.0
    %1255 = vmatpush1.msra.mxu0 0.0
    %1256 = vmatprep.subr.mxu0 0.0
    %1257 = vmatpush1.msra.mxu0 0.0
    %1258 = vmatprep.subr.mxu0 0.0
    %1259 = vmatpush1.msra.mxu0 0.0
    %1260 = vmatprep.subr.mxu0 0.0
    %1261 = vmatpush1.msra.mxu0 0.0
    %1262 = vmatprep.subr.mxu0 0.0
    %1263 = vmatpush1.msra.mxu0 0.0
    %1264 = vmatprep.subr.mxu0 0.0
    %1265 = vmatpush1.msra.mxu0 0.0
    %1266 = vmatprep.subr.mxu0 0.0
    %1267 = vmatpush1.msra.mxu0 0.0
    %1268 = vmatprep.subr.mxu0 0.0
    %1269 = vmatpush1.msra.mxu0 0.0
    %1270 = vmatprep.subr.mxu0 0.0
    %1271 = vmatpush1.msra.mxu0 0.0
    %1272 = vmatprep.subr.mxu0 0.0
    %1273 = vmatpush1.msra.mxu0 0.0
    %1274 = vmatprep.subr.mxu0 0.0
    %1275 = vmatpush1.msra.mxu0 0.0
    %1276 = vmatprep.subr.mxu0 0.0
    %1277 = vmatpush1.msra.mxu0 0.0
    %1278 = vmatprep.subr.mxu0 0.0
    %1279 = vmatpush1.msra.mxu0 0.0
    %1280 = vmatprep.subr.mxu0 0.0
    %1281 = vmatpush1.msra.mxu0 0.0
    %1282 = vmatprep.subr.mxu0 0.0
    %1283 = vmatpush1.msra.mxu0 0.0
    %1284 = vmatprep.subr.mxu0 0.0
    %1285 = vmatpush1.msra.mxu0 0.0
    %1286 = vmatprep.subr.mxu0 0.0
    %1287 = vmatpush1.msra.mxu0 0.0
    %1288 = vmatprep.subr.mxu0 0.0
    %1289 = vmatpush1.msra.mxu0 0.0
    %1290 = vmatprep.subr.mxu0 0.0
    %1291 = vmatpush1.msra.mxu0 0.0
    %1292 = vmatprep.mubr.f32.mxu0 0.0
    %1293 = vmatmul.mubr.f32.gmra.mrb[0].mxu0 %v1226
    %v1294 = vpop.f32.mrb[0].mxu0
    %v1295 = vadd.f32 0.0, %v1294
    %v1296 = vpop.f32.mrb[0].mxu0
    %1297 = vdwg.mxu0
    %v1298 = vadd.f32 %v283, %v1295
    %v1299 = vtanh.pop %v1298
    %1301 = vrot.lane.b32.xlu0 %v1224, 64
    %v1302 = vpop.permute.xlu0 %1301
    %v1304 = vsel %vm322, %v1299, %v1302
    %1305 = vmatprep.subr.mxu0 0.0
    %1306 = vmatpush1.msra.mxu0 %v299
    %1307 = vmatprep.subr.mxu0 0.0
    %1308 = vmatpush1.msra.mxu0 %v300
    %1309 = vmatprep.subr.mxu0 0.0
    %1310 = vmatpush1.msra.mxu0 %v301
    %1311 = vmatprep.subr.mxu0 0.0
    %1312 = vmatpush1.msra.mxu0 %v302
    %1313 = vmatprep.subr.mxu0 0.0
    %1314 = vmatpush1.msra.mxu0 %v303
    %1315 = vmatprep.subr.mxu0 0.0
    %1316 = vmatpush1.msra.mxu0 %v304
    %1317 = vmatprep.subr.mxu0 0.0
    %1318 = vmatpush1.msra.mxu0 %v305
    %1319 = vmatprep.subr.mxu0 0.0
    %1320 = vmatpush1.msra.mxu0 %v306
    %1321 = vmatprep.subr.mxu0 0.0
    %1322 = vmatpush1.msra.mxu0 %v307
    %1323 = vmatprep.subr.mxu0 0.0
    %1324 = vmatpush1.msra.mxu0 %v308
    %1325 = vmatprep.subr.mxu0 0.0
    %1326 = vmatpush1.msra.mxu0 %v309
    %1327 = vmatprep.subr.mxu0 0.0
    %1328 = vmatpush1.msra.mxu0 %v310
    %1329 = vmatprep.subr.mxu0 0.0
    %1330 = vmatpush1.msra.mxu0 %v311
    %1331 = vmatprep.subr.mxu0 0.0
    %1332 = vmatpush1.msra.mxu0 %v312
    %1333 = vmatprep.subr.mxu0 0.0
    %1334 = vmatpush1.msra.mxu0 %v313
    %1335 = vmatprep.subr.mxu0 0.0
    %1336 = vmatpush1.msra.mxu0 %v314
    %1337 = vmatprep.subr.mxu0 0.0
    %1338 = vmatpush1.msra.mxu0 0.0
    %1339 = vmatprep.subr.mxu0 0.0
    %1340 = vmatpush1.msra.mxu0 0.0
    %1341 = vmatprep.subr.mxu0 0.0
    %1342 = vmatpush1.msra.mxu0 0.0
    %1343 = vmatprep.subr.mxu0 0.0
    %1344 = vmatpush1.msra.mxu0 0.0
    %1345 = vmatprep.subr.mxu0 0.0
    %1346 = vmatpush1.msra.mxu0 0.0
    %1347 = vmatprep.subr.mxu0 0.0
    %1348 = vmatpush1.msra.mxu0 0.0
    %1349 = vmatprep.subr.mxu0 0.0
    %1350 = vmatpush1.msra.mxu0 0.0
    %1351 = vmatprep.subr.mxu0 0.0
    %1352 = vmatpush1.msra.mxu0 0.0
    %1353 = vmatprep.subr.mxu0 0.0
    %1354 = vmatpush1.msra.mxu0 0.0
    %1355 = vmatprep.subr.mxu0 0.0
    %1356 = vmatpush1.msra.mxu0 0.0
    %1357 = vmatprep.subr.mxu0 0.0
    %1358 = vmatpush1.msra.mxu0 0.0
    %1359 = vmatprep.subr.mxu0 0.0
    %1360 = vmatpush1.msra.mxu0 0.0
    %1361 = vmatprep.subr.mxu0 0.0
    %1362 = vmatpush1.msra.mxu0 0.0
    %1363 = vmatprep.subr.mxu0 0.0
    %1364 = vmatpush1.msra.mxu0 0.0
    %1365 = vmatprep.subr.mxu0 0.0
    %1366 = vmatpush1.msra.mxu0 0.0
    %1367 = vmatprep.subr.mxu0 0.0
    %1368 = vmatpush1.msra.mxu0 0.0
    %1369 = vmatprep.mubr.f32.mxu0 0.0
    %1370 = vmatmul.mubr.f32.gmra.mrb[0].mxu0 %v1304
    %v1371 = vpop.f32.mrb[0].mxu0
    %v1372 = vadd.f32 %v320, %v1371
    %v1373 = vpop.f32.mrb[0].mxu0
    %1374 = vdwg.mxu0
    %v1375 = vtanh.pop %v1372
    %v1377 = vsel %vm322, %v1299, 0
    %1379 = vmatprep.subr.mxu0 0.0
    %1380 = vmatpush1.msra.mxu0 %v291
    %1381 = vmatprep.subr.mxu0 0.0
    %1382 = vmatpush1.msra.mxu0 %v292
    %1383 = vmatprep.subr.mxu0 0.0
    %1384 = vmatpush1.msra.mxu0 %v293
    %1385 = vmatprep.subr.mxu0 0.0
    %1386 = vmatpush1.msra.mxu0 %v294
    %1387 = vmatprep.subr.mxu0 0.0
    %1388 = vmatpush1.msra.mxu0 %v295
    %1389 = vmatprep.subr.mxu0 0.0
    %1390 = vmatpush1.msra.mxu0 %v296
    %1391 = vmatprep.subr.mxu0 0.0
    %1392 = vmatpush1.msra.mxu0 %v297
    %1393 = vmatprep.subr.mxu0 0.0
    %1394 = vmatpush1.msra.mxu0 %v298
    %1395 = vmatprep.subr.mxu0 0.0
    %1396 = vmatpush1.msra.mxu0 0.0
    %1397 = vmatprep.subr.mxu0 0.0
    %1398 = vmatpush1.msra.mxu0 0.0
    %1399 = vmatprep.subr.mxu0 0.0
    %1400 = vmatpush1.msra.mxu0 0.0
    %1401 = vmatprep.subr.mxu0 0.0
    %1402 = vmatpush1.msra.mxu0 0.0
    %1403 = vmatprep.subr.mxu0 0.0
    %1404 = vmatpush1.msra.mxu0 0.0
    %1405 = vmatprep.subr.mxu0 0.0
    %1406 = vmatpush1.msra.mxu0 0.0
    %1407 = vmatprep.subr.mxu0 0.0
    %1408 = vmatpush1.msra.mxu0 0.0
    %1409 = vmatprep.subr.mxu0 0.0
    %1410 = vmatpush1.msra.mxu0 0.0
    %1411 = vmatprep.subr.mxu0 0.0
    %1412 = vmatpush1.msra.mxu0 0.0
    %1413 = vmatprep.subr.mxu0 0.0
    %1414 = vmatpush1.msra.mxu0 0.0
    %1415 = vmatprep.subr.mxu0 0.0
    %1416 = vmatpush1.msra.mxu0 0.0
    %1417 = vmatprep.subr.mxu0 0.0
    %1418 = vmatpush1.msra.mxu0 0.0
    %1419 = vmatprep.subr.mxu0 0.0
    %1420 = vmatpush1.msra.mxu0 0.0
    %1421 = vmatprep.subr.mxu0 0.0
    %1422 = vmatpush1.msra.mxu0 0.0
    %1423 = vmatprep.subr.mxu0 0.0
    %1424 = vmatpush1.msra.mxu0 0.0
    %1425 = vmatprep.subr.mxu0 0.0
    %1426 = vmatpush1.msra.mxu0 0.0
    %1427 = vmatprep.subr.mxu0 0.0
    %1428 = vmatpush1.msra.mxu0 0.0
    %1429 = vmatprep.subr.mxu0 0.0
    %1430 = vmatpush1.msra.mxu0 0.0
    %1431 = vmatprep.subr.mxu0 0.0
    %1432 = vmatpush1.msra.mxu0 0.0
    %1433 = vmatprep.subr.mxu0 0.0
    %1434 = vmatpush1.msra.mxu0 0.0
    %1435 = vmatprep.subr.mxu0 0.0
    %1436 = vmatpush1.msra.mxu0 0.0
    %1437 = vmatprep.subr.mxu0 0.0
    %1438 = vmatpush1.msra.mxu0 0.0
    %1439 = vmatprep.subr.mxu0 0.0
    %1440 = vmatpush1.msra.mxu0 0.0
    %1441 = vmatprep.subr.mxu0 0.0
    %1442 = vmatpush1.msra.mxu0 0.0
    %1443 = vmatprep.mubr.f32.mxu0 0.0
    %1444 = vmatmul.mubr.f32.gmra.mrb[0].mxu0 %v1377
    %v1445 = vpop.f32.mrb[0].mxu0
    %v1446 = vadd.f32 0.0, %v1445
    %v1447 = vpop.f32.mrb[0].mxu0
    %1448 = vdwg.mxu0
    %v1449 = vadd.f32 %v288, %v1446
    %v1450 = vtanh.pop %v1449
    %1452 = vrot.lane.b32.xlu0 %v1375, 64
    %v1453 = vpop.permute.xlu0 %1452
    %v1455 = vsel %vm322, %v1450, %v1453
    %1456 = vmatprep.subr.mxu0 0.0
    %1457 = vmatpush1.msra.mxu0 %v299
    %1458 = vmatprep.subr.mxu0 0.0
    %1459 = vmatpush1.msra.mxu0 %v300
    %1460 = vmatprep.subr.mxu0 0.0
    %1461 = vmatpush1.msra.mxu0 %v301
    %1462 = vmatprep.subr.mxu0 0.0
    %1463 = vmatpush1.msra.mxu0 %v302
    %1464 = vmatprep.subr.mxu0 0.0
    %1465 = vmatpush1.msra.mxu0 %v303
    %1466 = vmatprep.subr.mxu0 0.0
    %1467 = vmatpush1.msra.mxu0 %v304
    %1468 = vmatprep.subr.mxu0 0.0
    %1469 = vmatpush1.msra.mxu0 %v305
    %1470 = vmatprep.subr.mxu0 0.0
    %1471 = vmatpush1.msra.mxu0 %v306
    %1472 = vmatprep.subr.mxu0 0.0
    %1473 = vmatpush1.msra.mxu0 %v307
    %1474 = vmatprep.subr.mxu0 0.0
    %1475 = vmatpush1.msra.mxu0 %v308
    %1476 = vmatprep.subr.mxu0 0.0
    %1477 = vmatpush1.msra.mxu0 %v309
    %1478 = vmatprep.subr.mxu0 0.0
    %1479 = vmatpush1.msra.mxu0 %v310
    %1480 = vmatprep.subr.mxu0 0.0
    %1481 = vmatpush1.msra.mxu0 %v311
    %1482 = vmatprep.subr.mxu0 0.0
    %1483 = vmatpush1.msra.mxu0 %v312
    %1484 = vmatprep.subr.mxu0 0.0
    %1485 = vmatpush1.msra.mxu0 %v313
    %1486 = vmatprep.subr.mxu0 0.0
    %1487 = vmatpush1.msra.mxu0 %v314
    %1488 = vmatprep.subr.mxu0 0.0
    %1489 = vmatpush1.msra.mxu0 0.0
    %1490 = vmatprep.subr.mxu0 0.0
    %1491 = vmatpush1.msra.mxu0 0.0
    %1492 = vmatprep.subr.mxu0 0.0
    %1493 = vmatpush1.msra.mxu0 0.0
    %1494 = vmatprep.subr.mxu0 0.0
    %1495 = vmatpush1.msra.mxu0 0.0
    %1496 = vmatprep.subr.mxu0 0.0
    %1497 = vmatpush1.msra.mxu0 0.0
    %1498 = vmatprep.subr.mxu0 0.0
    %1499 = vmatpush1.msra.mxu0 0.0
    %1500 = vmatprep.subr.mxu0 0.0
    %1501 = vmatpush1.msra.mxu0 0.0
    %1502 = vmatprep.subr.mxu0 0.0
    %1503 = vmatpush1.msra.mxu0 0.0
    %1504 = vmatprep.subr.mxu0 0.0
    %1505 = vmatpush1.msra.mxu0 0.0
    %1506 = vmatprep.subr.mxu0 0.0
    %1507 = vmatpush1.msra.mxu0 0.0
    %1508 = vmatprep.subr.mxu0 0.0
    %1509 = vmatpush1.msra.mxu0 0.0
    %1510 = vmatprep.subr.mxu0 0.0
    %1511 = vmatpush1.msra.mxu0 0.0
    %1512 = vmatprep.subr.mxu0 0.0
    %1513 = vmatpush1.msra.mxu0 0.0
    %1514 = vmatprep.subr.mxu0 0.0
    %1515 = vmatpush1.msra.mxu0 0.0
    %1516 = vmatprep.subr.mxu0 0.0
    %1517 = vmatpush1.msra.mxu0 0.0
    %1518 = vmatprep.subr.mxu0 0.0
    %1519 = vmatpush1.msra.mxu0 0.0
    %1520 = vmatprep.mubr.f32.mxu0 0.0
    %1521 = vmatmul.mubr.f32.gmra.mrb[0].mxu0 %v1455
    %v1522 = vpop.f32.mrb[0].mxu0
    %v1523 = vadd.f32 %v320, %v1522
    %v1524 = vpop.f32.mrb[0].mxu0
    %1525 = vdwg.mxu0
    %v1526 = vtanh.pop %v1523
    %v1527 = vld [vmem:[%s7] sm:$0xff]
    %v1528 = vld [vmem:[%s7 + $0x8] sm:$0xff]
    %v1529 = vld [vmem:[%s7 + $0x10] sm:$0xff]
    %v1530 = vld [vmem:[%s7 + $0x18] sm:$0xff]
    %v1531 = vld [vmem:[%s7 + $0x20] sm:$0xff]
    %v1532 = vld [vmem:[%s7 + $0x28] sm:$0xff]
    %v1533 = vld [vmem:[%s7 + $0x30] sm:$0xff]
    %v1534 = vld [vmem:[%s7 + $0x38] sm:$0xff]
    %v1535 = vld [vmem:[%s8] sm:$0x1]
    %v1537 = vlaneseq
    %v1538 = vshrl.u32 %v1537, 7
    %v1539 = vsub.s32 0, %v1538
    %v1540 = vrot.slane %v1535, %v1539
    %v1542 = vsel %vm322, %v469, 0
    %v1544 = vsel %vm322, %v620, 0
    %v1546 = vsel %vm322, %v771, 0
    %v1548 = vsel %vm322, %v922, 0
    %v1550 = vsel %vm322, %v1073, 0
    %v1552 = vsel %vm322, %v1224, 0
    %v1554 = vsel %vm322, %v1375, 0
    %v1557 = vsel %vm322, %v1526, 0
    %1559 = vmatprep.subr.mxu0 0.0
    %1560 = vmatpush1.msra.mxu0 %v1527
    %1561 = vmatprep.subr.mxu0 0.0
    %1562 = vmatpush1.msra.mxu0 %v1528
    %1563 = vmatprep.subr.mxu0 0.0
    %1564 = vmatpush1.msra.mxu0 %v1529
    %1565 = vmatprep.subr.mxu0 0.0
    %1566 = vmatpush1.msra.mxu0 %v1530
    %1567 = vmatprep.subr.mxu0 0.0
    %1568 = vmatpush1.msra.mxu0 %v1531
    %1569 = vmatprep.subr.mxu0 0.0
    %1570 = vmatpush1.msra.mxu0 %v1532
    %1571 = vmatprep.subr.mxu0 0.0
    %1572 = vmatpush1.msra.mxu0 %v1533
    %1573 = vmatprep.subr.mxu0 0.0
    %1574 = vmatpush1.msra.mxu0 %v1534
    %1575 = vmatprep.subr.mxu0 0.0
    %1576 = vmatpush1.msra.mxu0 0.0
    %1577 = vmatprep.subr.mxu0 0.0
    %1578 = vmatpush1.msra.mxu0 0.0
    %1579 = vmatprep.subr.mxu0 0.0
    %1580 = vmatpush1.msra.mxu0 0.0
    %1581 = vmatprep.subr.mxu0 0.0
    %1582 = vmatpush1.msra.mxu0 0.0
    %1583 = vmatprep.subr.mxu0 0.0
    %1584 = vmatpush1.msra.mxu0 0.0
    %1585 = vmatprep.subr.mxu0 0.0
    %1586 = vmatpush1.msra.mxu0 0.0
    %1587 = vmatprep.subr.mxu0 0.0
    %1588 = vmatpush1.msra.mxu0 0.0
    %1589 = vmatprep.subr.mxu0 0.0
    %1590 = vmatpush1.msra.mxu0 0.0
    %1591 = vmatprep.subr.mxu0 0.0
    %1592 = vmatpush1.msra.mxu0 0.0
    %1593 = vmatprep.subr.mxu0 0.0
    %1594 = vmatpush1.msra.mxu0 0.0
    %1595 = vmatprep.subr.mxu0 0.0
    %1596 = vmatpush1.msra.mxu0 0.0
    %1597 = vmatprep.subr.mxu0 0.0
    %1598 = vmatpush1.msra.mxu0 0.0
    %1599 = vmatprep.subr.mxu0 0.0
    %1600 = vmatpush1.msra.mxu0 0.0
    %1601 = vmatprep.subr.mxu0 0.0
    %1602 = vmatpush1.msra.mxu0 0.0
    %1603 = vmatprep.subr.mxu0 0.0
    %1604 = vmatpush1.msra.mxu0 0.0
    %1605 = vmatprep.subr.mxu0 0.0
    %1606 = vmatpush1.msra.mxu0 0.0
    %1607 = vmatprep.subr.mxu0 0.0
    %1608 = vmatpush1.msra.mxu0 0.0
    %1609 = vmatprep.subr.mxu0 0.0
    %1610 = vmatpush1.msra.mxu0 0.0
    %1611 = vmatprep.subr.mxu0 0.0
    %1612 = vmatpush1.msra.mxu0 0.0
    %1613 = vmatprep.subr.mxu0 0.0
    %1614 = vmatpush1.msra.mxu0 0.0
    %1615 = vmatprep.subr.mxu0 0.0
    %1616 = vmatpush1.msra.mxu0 0.0
    %1617 = vmatprep.subr.mxu0 0.0
    %1618 = vmatpush1.msra.mxu0 0.0
    %1619 = vmatprep.subr.mxu0 0.0
    %1620 = vmatpush1.msra.mxu0 0.0
    %1621 = vmatprep.subr.mxu0 0.0
    %1622 = vmatpush1.msra.mxu0 0.0
    %1623 = vmatprep.mubr.f32.mxu0 0.0
    %1624 = vmatmul.mubr.f32.gmra.mrb[0].mxu0 %v1542
    %v1625 = vpop.f32.mrb[0].mxu0
    %v1626 = vadd.f32 %v1540, %v1625
    %v1627 = vpop.f32.mrb[0].mxu0
    %1628 = vmatprep.mubr.f32.mxu0 0.0
    %1629 = vmatmul.mubr.f32.gmra.mrb[0].mxu0 %v1544
    %v1630 = vpop.f32.mrb[0].mxu0
    %v1631 = vadd.f32 %v1540, %v1630
    %v1632 = vpop.f32.mrb[0].mxu0
    %1633 = vmatprep.mubr.f32.mxu0 0.0
    %1634 = vmatmul.mubr.f32.gmra.mrb[0].mxu0 %v1546
    %v1635 = vpop.f32.mrb[0].mxu0
    %v1636 = vadd.f32 %v1540, %v1635
    %v1637 = vpop.f32.mrb[0].mxu0
    %1638 = vmatprep.mubr.f32.mxu0 0.0
    %1639 = vmatmul.mubr.f32.gmra.mrb[0].mxu0 %v1548
    %v1640 = vpop.f32.mrb[0].mxu0
    %v1641 = vadd.f32 %v1540, %v1640
    %v1642 = vpop.f32.mrb[0].mxu0
    %1643 = vmatprep.mubr.f32.mxu0 0.0
    %1644 = vmatmul.mubr.f32.gmra.mrb[0].mxu0 %v1550
    %v1645 = vpop.f32.mrb[0].mxu0
    %v1646 = vadd.f32 %v1540, %v1645
    %v1647 = vpop.f32.mrb[0].mxu0
    %1648 = vmatprep.mubr.f32.mxu0 0.0
    %1649 = vmatmul.mubr.f32.gmra.mrb[0].mxu0 %v1552
    %v1650 = vpop.f32.mrb[0].mxu0
    %v1651 = vadd.f32 %v1540, %v1650
    %v1652 = vpop.f32.mrb[0].mxu0
    %1653 = vmatprep.mubr.f32.mxu0 0.0
    %1654 = vmatmul.mubr.f32.gmra.mrb[0].mxu0 %v1554
    %v1655 = vpop.f32.mrb[0].mxu0
    %v1656 = vadd.f32 %v1540, %v1655
    %v1657 = vpop.f32.mrb[0].mxu0
    %1658 = vmatprep.mubr.f32.mxu0 0.0
    %1659 = vmatmul.mubr.f32.gmra.mrb[0].mxu0 %v1557
    %v1660 = vpop.f32.mrb[0].mxu0
    %v1661 = vadd.f32 %v1540, %v1660
    %v1662 = vpop.f32.mrb[0].mxu0
    %1663 = vdwg.mxu0
    %1664 = vst [vmem:[#allocation2] sm:$0xff] %v1626
    %1665 = vst [vmem:[#allocation2 + $0x8] sm:$0xff] %v1631
    %1666 = vst [vmem:[#allocation2 + $0x10] sm:$0xff] %v1636
    %1667 = vst [vmem:[#allocation2 + $0x18] sm:$0xff] %v1641
    %1668 = vst [vmem:[#allocation2 + $0x20] sm:$0xff] %v1646
    %1669 = vst [vmem:[#allocation2 + $0x28] sm:$0xff] %v1651
    %1670 = vst [vmem:[#allocation2 + $0x30] sm:$0xff] %v1656
    %1671 = vst [vmem:[#allocation2 + $0x38] sm:$0xff] %v1661
    // Predicated region
    $region38: #{tpu_custom_call.1} parent=1 // pred_check
      _
    $region39: #{tpu_custom_call.1} parent=1 // pred_check_branch
      %1673 = sbr.rel (0) target = $region41
    $region40: #{tpu_custom_call.1} parent=1 // pred_region
      %s1675 = ssub.s32 1024, 1024
      %1676 = vsyncadd [#allocation3], %s1675
      %s1677 = sshll.u32 [#allocation2], 4
      %s1678 = int_to_ptr.vmem [resolvable:$true] %s1677
      %1683 = dma.vmem_to_hbm [thread:$0]  %s1678, 1024, %s9, [#allocation3], 128, 128, 8
    $region41: #{tpu_custom_call.1} parent=1 // pred_fallthru
      _
    // Predicated region
    $region42: #{tpu_custom_call.1} parent=1 // pred_check
      _
    $region43: #{tpu_custom_call.1} parent=1 // pred_check_branch
      %1685 = sbr.rel (0) target = $region45
    $region44: #{tpu_custom_call.1} parent=1 // pred_region
      %1686 = dma.done [#allocation3], 1024
    $region45: #{tpu_custom_call.1} parent=1 // pred_fallthru
      _
    %1687 = vsyncpa [#allocation3], 1

</llo_original>
